<compile_context>
chip_gen: v6e
topology: v6e:2x2x1
jax: 0.10.0
libtpu: 0.0.40
codegen_flags: <defaults>
</compile_context>

<pallas_src>
import functools

import jax
import jax.numpy as jnp
from jax.experimental import pallas as pl
from jax.experimental.pallas import tpu as pltpu

LN_EPS = 1e-5
# MXU operand dtype.  bf16 is the native fast path on v5e/v6e/v7x.
# TODO(synk): per-generation quantized path (int8 on v5e/v6e, fp8 on v7x) would
# switch this and dequant-scale in the epilogue; treated as exact bf16 here.
COMPUTE_DTYPE = jnp.bfloat16
VMEM_LIMIT_BYTES = 48 * 1024 * 1024   # fits v7x's 64 MiB physical VMEM


def _cparams(sem):
    return pltpu.CompilerParams(dimension_semantics=sem,
                                vmem_limit_bytes=VMEM_LIMIT_BYTES)


# --------------------------------------------------------------------------
# Linear, single K step (K fits in one tile):  grid (M//tm, N//tn), j inner.
#   optional LN prologue (computed once per row tile at j == 0, cached in a
#   VMEM scratch in COMPUTE_DTYPE), optional relu, optional residual add,
#   optional LayerNorm epilogue (requires tn == N).
# --------------------------------------------------------------------------
def _linear_fusedK_kernel(*refs, fuse_ln, activation, add_residual, ln_out):
    idx = 0
    if fuse_ln:
        g_ref, bln_ref = refs[idx:idx + 2]
        idx += 2
    x_ref, w_ref, bias_ref = refs[idx:idx + 3]
    idx += 3
    if add_residual:
        res_ref = refs[idx]
        idx += 1
    if ln_out:
        g2_ref, b2_ref = refs[idx:idx + 2]
        idx += 2
    o_ref, xc_ref = refs[idx], refs[idx + 1]

    j = pl.program_id(1)

    # Normalize/cast the x row tile once per i; its block index is independent
    # of j so it stays resident in VMEM for the whole N sweep.
    @pl.when(j == 0)
    def _():
        if fuse_ln:
            x = x_ref[...].astype(jnp.float32)
            mu = jnp.mean(x, axis=-1, keepdims=True)
            var = jnp.mean(jnp.square(x - mu), axis=-1, keepdims=True)
            x = (x - mu) * jax.lax.rsqrt(var + LN_EPS) * g_ref[...] + bln_ref[...]
            xc_ref[...] = x.astype(xc_ref.dtype)
        else:
            xc_ref[...] = x_ref[...].astype(xc_ref.dtype)

    # Native bf16 MXU matmul, f32 accumulation.
    y = jnp.dot(xc_ref[...], w_ref[...], preferred_element_type=jnp.float32)
    y = y + bias_ref[...]
    if activation == "relu":
        y = jnp.maximum(y, 0.0)
    if add_residual:
        y = y + res_ref[...].astype(jnp.float32)
    if ln_out:
        mu = jnp.mean(y, axis=-1, keepdims=True)
        var = jnp.mean(jnp.square(y - mu), axis=-1, keepdims=True)
        y = (y - mu) * jax.lax.rsqrt(var + LN_EPS) * g2_ref[...] + b2_ref[...]
    o_ref[...] = y.astype(o_ref.dtype)


# --------------------------------------------------------------------------
# Linear, K-tiled: grid (M//tm, N//tn, K//tk) with f32 VMEM accumulator.
# (Used when K is too large for a single resident x tile, e.g. fc2: K = 4*D.)
# --------------------------------------------------------------------------
def _linear_tiledK_kernel(*refs, activation, add_residual, ln_out):
    idx = 0
    x_ref, w_ref, bias_ref = refs[idx:idx + 3]
    idx += 3
    if add_residual:
        res_ref = refs[idx]
        idx += 1
    if ln_out:
        g2_ref, b2_ref = refs[idx:idx + 2]
        idx += 2
    o_ref, acc_ref = refs[idx], refs[idx + 1]

    k = pl.program_id(2)

    @pl.when(k == 0)
    def _():
        acc_ref[...] = jnp.zeros(acc_ref.shape, jnp.float32)

    acc_ref[...] += jnp.dot(x_ref[...].astype(COMPUTE_DTYPE), w_ref[...],
                            preferred_element_type=jnp.float32)

    @pl.when(k == pl.num_programs(2) - 1)
    def _():
        y = acc_ref[...] + bias_ref[...]
        if activation == "relu":
            y = jnp.maximum(y, 0.0)
        if add_residual:
            y = y + res_ref[...].astype(jnp.float32)
        if ln_out:
            mu = jnp.mean(y, axis=-1, keepdims=True)
            var = jnp.mean(jnp.square(y - mu), axis=-1, keepdims=True)
            y = (y - mu) * jax.lax.rsqrt(var + LN_EPS) * g2_ref[...] + b2_ref[...]
        o_ref[...] = y.astype(o_ref.dtype)


def linear(x, w_t, bias, *, ln=None, residual=None, activation=None,
           ln_out=None, out_dtype=None, tm=128, tn=256, tk=None):
    """y = [LN(x)] @ w_t + bias [+relu] [+residual] [-> LN]; w_t is [K, N] bf16."""
    M, K = x.shape
    K2, N = w_t.shape
    assert K == K2
    tm = min(tm, M)
    tn = min(tn, N)
    assert M % tm == 0 and N % tn == 0
    out_dtype = out_dtype or x.dtype
    fuse_ln = ln is not None
    add_residual = residual is not None
    has_ln_out = ln_out is not None
    if has_ln_out:
        assert tn == N, "epilogue LayerNorm needs the full row in one output tile"

    bias2d = bias.reshape(1, N).astype(jnp.float32)
    single_k = (tk is None) or (tk >= K)

    if single_k:
        in_specs, args = [], []
        if fuse_ln:
            g, b = ln
            in_specs += [pl.BlockSpec((1, K), lambda i, j: (0, 0)),
                         pl.BlockSpec((1, K), lambda i, j: (0, 0))]
            args += [g.reshape(1, K).astype(jnp.float32),
                     b.reshape(1, K).astype(jnp.float32)]
        in_specs += [pl.BlockSpec((tm, K), lambda i, j: (i, 0)),
                     pl.BlockSpec((K, tn), lambda i, j: (0, j)),
                     pl.BlockSpec((1, tn), lambda i, j: (0, j))]
        args += [x, w_t, bias2d]
        if add_residual:
            in_specs += [pl.BlockSpec((tm, tn), lambda i, j: (i, j))]
            args += [residual]
        if has_ln_out:
            g2, b2 = ln_out
            in_specs += [pl.BlockSpec((1, tn), lambda i, j: (0, j)),
                         pl.BlockSpec((1, tn), lambda i, j: (0, j))]
            args += [g2.reshape(1, N).astype(jnp.float32),
                     b2.reshape(1, N).astype(jnp.float32)]
        kern = functools.partial(_linear_fusedK_kernel, fuse_ln=fuse_ln,
                                 activation=activation,
                                 add_residual=add_residual, ln_out=has_ln_out)
        return pl.pallas_call(
            kern,
            out_shape=jax.ShapeDtypeStruct((M, N), out_dtype),
            grid=(M // tm, N // tn),
            in_specs=in_specs,
            out_specs=pl.BlockSpec((tm, tn), lambda i, j: (i, j)),
            scratch_shapes=[pltpu.VMEM((tm, K), COMPUTE_DTYPE)],
            # j is "arbitrary": the normalized-x scratch written at j==0 is
            # reused across the N sweep; i is sharded across TensorCores.
            compiler_params=_cparams(("parallel", "arbitrary")),
        )(*args)

    # K-tiled path (LN prologue not needed here; fc2 has no LN before it).
    assert not fuse_ln and K % tk == 0
    in_specs = [pl.BlockSpec((tm, tk), lambda i, j, k: (i, k)),
                pl.BlockSpec((tk, tn), lambda i, j, k: (k, j)),
                pl.BlockSpec((1, tn), lambda i, j, k: (0, j))]
    args = [x, w_t, bias2d]
    if add_residual:
        in_specs += [pl.BlockSpec((tm, tn), lambda i, j, k: (i, j))]
        args += [residual]
    if has_ln_out:
        g2, b2 = ln_out
        in_specs += [pl.BlockSpec((1, tn), lambda i, j, k: (0, j)),
                     pl.BlockSpec((1, tn), lambda i, j, k: (0, j))]
        args += [g2.reshape(1, N).astype(jnp.float32),
                 b2.reshape(1, N).astype(jnp.float32)]
    kern = functools.partial(_linear_tiledK_kernel, activation=activation,
                             add_residual=add_residual, ln_out=has_ln_out)
    return pl.pallas_call(
        kern,
        out_shape=jax.ShapeDtypeStruct((M, N), out_dtype),
        grid=(M // tm, N // tn, K // tk),
        in_specs=in_specs,
        out_specs=pl.BlockSpec((tm, tn), lambda i, j, k: (i, j)),
        scratch_shapes=[pltpu.VMEM((tm, tn), jnp.float32)],
        compiler_params=_cparams(("parallel", "parallel", "arbitrary")),
    )(*args)


# --------------------------------------------------------------------------
# Flash attention over the fused QKV tensor.
#   qkv : [B, T, 3*H*Dh] (bf16; Q columns pre-scaled by Dh**-0.5)
#   out : [B, T, H*Dh]   (head-interleaved -> no post-transpose)
# Grid (B, H, T//tq, T//tkv); online-softmax (m, l, acc) scratch per Q tile.
# causal=True  -> mask generated in-kernel (iota compare), fully-masked KV
#                 tiles skipped and their K/V DMAs elided via clamped index maps.
# explicit attention_mask -> additive mask streamed (module fallback path).
# --------------------------------------------------------------------------
def _flash_attn_kernel(*refs, tq, tkv, causal, has_mask):
    q_ref, k_ref, v_ref = refs[0:3]
    idx = 3
    if has_mask:
        mask_ref = refs[idx]
        idx += 1
    o_ref = refs[idx]
    m_sc, l_sc, acc_sc = refs[idx + 1:idx + 4]

    qi = pl.program_id(2)
    kv = pl.program_id(3)
    if causal:
        kv_last = (qi * tq + tq - 1) // tkv      # last KV tile that contributes
    else:
        kv_last = pl.num_programs(3) - 1

    @pl.when(kv == 0)
    def _():
        m_sc[...] = jnp.full(m_sc.shape, -1e30, jnp.float32)
        l_sc[...] = jnp.zeros(l_sc.shape, jnp.float32)
        acc_sc[...] = jnp.zeros(acc_sc.shape, jnp.float32)

    def compute():
        q = q_ref[0]                               # [tq, Dh]  bf16 (pre-scaled)
        k = k_ref[0]                               # [tkv, Dh] bf16
        v = v_ref[0]                               # [tkv, Dh] bf16
        # q @ k^T, contracting Dh (no in-kernel transpose), bf16 MXU, f32 acc.
        s = jax.lax.dot_general(q, k, (((1,), (1,)), ((), ())),
                                preferred_element_type=jnp.float32)  # [tq, tkv]
        if has_mask:
            s = s + mask_ref[0, 0].astype(jnp.float32)
        if causal:
            row = qi * tq + jax.lax.broadcasted_iota(jnp.int32, (tq, tkv), 0)
            col = kv * tkv + jax.lax.broadcasted_iota(jnp.int32, (tq, tkv), 1)
            s = jnp.where(col <= row, s, -1e30)
        m_prev = m_sc[...]
        m_new = jnp.maximum(m_prev, jnp.max(s, axis=-1, keepdims=True))
        alpha = jnp.exp(m_prev - m_new)
        p = jnp.exp(s - m_new)
        l_sc[...] = alpha * l_sc[...] + jnp.sum(p, axis=-1, keepdims=True)
        acc_sc[...] = alpha * acc_sc[...] + jnp.dot(
            p.astype(v.dtype), v, preferred_element_type=jnp.float32)
        m_sc[...] = m_new

    if causal:
        pl.when(kv <= kv_last)(compute)    # skip fully-masked KV tiles
    else:
        compute()

    @pl.when(kv == kv_last)
    def _():
        o = acc_sc[...] * pl.reciprocal(l_sc[...], approx=True)
        o_ref[0] = o.astype(o_ref.dtype)


def flash_attention(qkv, attention_mask=None, *, num_heads, head_dim,
                    causal=True, tq=128, tkv=128):
    B, T, threeD = qkv.shape
    H, Dh = num_heads, head_dim
    D = H * Dh
    assert threeD == 3 * D
    # TODO(synk): Dh must be a multiple of 128 (lane constraint on the fused
    # last dim); for Dh=64 OPT configs, block two heads per grid step.
    assert Dh % 128 == 0
    tq = min(tq, T)
    tkv = min(tkv, T)
    assert T % tq == 0 and T % tkv == 0

    has_mask = attention_mask is not None
    if has_mask:
        causal = False   # arbitrary additive mask supplied; process all tiles

    if causal:
        # Clamp the KV block index so skipped (fully masked) tiles repeat the
        # previous index and their DMA is elided by the pipeline.
        def k_idx(b, h, qi, kv):
            return (b, jnp.minimum(kv, (qi * tq + tq - 1) // tkv), H + h)

        def v_idx(b, h, qi, kv):
            return (b, jnp.minimum(kv, (qi * tq + tq - 1) // tkv), 2 * H + h)
    else:
        def k_idx(b, h, qi, kv):
            return (b, kv, H + h)

        def v_idx(b, h, qi, kv):
            return (b, kv, 2 * H + h)

    in_specs = [
        pl.BlockSpec((1, tq, Dh), lambda b, h, qi, kv: (b, qi, h)),   # Q
        pl.BlockSpec((1, tkv, Dh), k_idx),                            # K
        pl.BlockSpec((1, tkv, Dh), v_idx),                            # V
    ]
    args = [qkv, qkv, qkv]
    if has_mask:
        in_specs.append(pl.BlockSpec((1, 1, tq, tkv),
                                     lambda b, h, qi, kv: (b, 0, qi, kv)))
        args.append(attention_mask.astype(jnp.float32))

    kern = functools.partial(_flash_attn_kernel, tq=tq, tkv=tkv,
                             causal=causal, has_mask=has_mask)
    return pl.pallas_call(
        kern,
        out_shape=jax.ShapeDtypeStruct((B, T, D), qkv.dtype),
        grid=(B, H, T // tq, T // tkv),
        in_specs=in_specs,
        out_specs=pl.BlockSpec((1, tq, Dh), lambda b, h, qi, kv: (b, qi, h)),
        scratch_shapes=[pltpu.VMEM((tq, 1), jnp.float32),
                        pltpu.VMEM((tq, 1), jnp.float32),
                        pltpu.VMEM((tq, Dh), jnp.float32)],
        compiler_params=_cparams(("parallel", "parallel", "parallel",
                                  "arbitrary")),
    )(*args)


# --------------------------------------------------------------------------
# Host-side one-time weight repack: transpose nn.Linear [N, K] weights to
# [K, N] bf16, fuse Q/K/V, fold the 1/sqrt(Dh) scale into the Q columns.
# --------------------------------------------------------------------------
def pack_params(params, *, num_heads, embed_dim, weight_dtype=COMPUTE_DTYPE):
    Dh = embed_dim // num_heads
    scaling = Dh ** (-0.5)

    def wt(w):
        return jnp.asarray(w).T.astype(weight_dtype)

    return {
        "qkv_w_t": jnp.concatenate([(params["q_w"] * scaling).T,
                                    params["k_w"].T,
                                    params["v_w"].T], axis=1).astype(weight_dtype),
        "qkv_b": jnp.concatenate([params["q_b"] * scaling,
                                  params["k_b"],
                                  params["v_b"]], axis=0).astype(jnp.float32),
        "o_w_t": wt(params["o_w"]), "o_b": params["o_b"].astype(jnp.float32),
        "fc1_w_t": wt(params["fc1_w"]), "fc1_b": params["fc1_b"].astype(jnp.float32),
        "fc2_w_t": wt(params["fc2_w"]), "fc2_b": params["fc2_b"].astype(jnp.float32),
        "attn_ln_g": params["attn_ln_g"], "attn_ln_b": params["attn_ln_b"],
        "final_ln_g": params["final_ln_g"], "final_ln_b": params["final_ln_b"],
    }


# --------------------------------------------------------------------------
# Full decoder-layer forward (eval mode: dropout = identity).
# attention_mask=None -> causal mask generated in-kernel (fast path).
# --------------------------------------------------------------------------
def opt_decoder_layer_forward(hidden_states, attention_mask, packed, *,
                              num_heads, do_layer_norm_before=True,
                              tm=128, tn=256, tq=128, tkv=128):
    B, T, D = hidden_states.shape
    H = num_heads
    Dh = D // H

    x2d = hidden_states.reshape(B * T, D).astype(jnp.float32)
    residual = x2d

    # ---- self-attention block: [LN->] fused QKV -> flash attn -> out_proj(+res)[->LN]
    ln_pre = ((packed["attn_ln_g"], packed["attn_ln_b"])
              if do_layer_norm_before else None)
    qkv = linear(x2d, packed["qkv_w_t"], packed["qkv_b"], ln=ln_pre,
                 out_dtype=COMPUTE_DTYPE, tm=tm, tn=tn)               # [M, 3D] bf16

    attn = flash_attention(qkv.reshape(B, T, 3 * D), attention_mask,
                           num_heads=H, head_dim=Dh, causal=True,
                           tq=tq, tkv=tkv)                            # [B, T, D] bf16

    ln_post = (None if do_layer_norm_before
               else (packed["attn_ln_g"], packed["attn_ln_b"]))
    h = linear(attn.reshape(B * T, D), packed["o_w_t"], packed["o_b"],
               residual=residual, ln_out=ln_post, out_dtype=jnp.float32,
               tm=tm, tn=min(tn, D))                                  # [M, D] f32

    # ---- MLP block: [LN->] fc1+relu -> fc2(+res)[->LN]
    residual = h
    ln_pre = ((packed["final_ln_g"], packed["final_ln_b"])
              if do_layer_norm_before else None)
    h2 = linear(h, packed["fc1_w_t"], packed["fc1_b"], ln=ln_pre,
                activation="relu", out_dtype=COMPUTE_DTYPE,
                tm=tm, tn=tn)                                         # [M, FFN] bf16
    ln_post = (None if do_layer_norm_before
               else (packed["final_ln_g"], packed["final_ln_b"]))
    out = linear(h2, packed["fc2_w_t"], packed["fc2_b"], residual=residual,
                 ln_out=ln_post, out_dtype=jnp.float32,
                 tm=tm, tn=min(tn, D), tk=min(256, h2.shape[1]))      # [M, D] f32
    return out.reshape(B, T, D)

# TODO(synk): KV-cache (past_key_value), cross-attention, layer_head_mask and
# output_attentions paths of the module are not implemented (eval prefill only).


# --------------------------------------------------------------------------
# Pure-JAX reference (mirrors the PyTorch module, eval mode, f32)
# --------------------------------------------------------------------------
def _reference_forward(hidden_states, attention_mask, params, *, num_heads,
                       do_layer_norm_before=True):
    B, T, D = hidden_states.shape
    H = num_heads
    Dh = D // H
    scaling = Dh ** (-0.5)

    def ln(x, g, b):
        mu = jnp.mean(x, -1, keepdims=True)
        var = jnp.mean((x - mu) ** 2, -1, keepdims=True)
        return (x - mu) / jnp.sqrt(var + LN_EPS) * g + b

    x = hidden_states
    residual = x
    h = ln(x, params["attn_ln_g"], params["attn_ln_b"]) if do_layer_norm_before else x
    q = (h @ params["q_w"].T + params["q_b"]) * scaling
    k = h @ params["k_w"].T + params["k_b"]
    v = h @ params["v_w"].T + params["v_b"]

    def heads(t):
        return t.reshape(B, T, H, Dh).transpose(0, 2, 1, 3)

    qh, kh, vh = heads(q), heads(k), heads(v)
    s = jnp.einsum("bhqd,bhkd->bhqk", qh, kh) + attention_mask
    p = jax.nn.softmax(s, axis=-1)
    o = jnp.einsum("bhqk,bhkd->bhqd", p, vh).transpose(0, 2, 1, 3).reshape(B, T, D)
    o = o @ params["o_w"].T + params["o_b"]
    h = residual + o
    if not do_layer_norm_before:
        h = ln(h, params["attn_ln_g"], params["attn_ln_b"])

    residual = h
    h2 = ln(h, params["final_ln_g"], params["final_ln_b"]) if do_layer_norm_before else h
    h2 = jnp.maximum(h2 @ params["fc1_w"].T + params["fc1_b"], 0.0)
    h2 = h2 @ params["fc2_w"].T + params["fc2_b"]
    out = residual + h2
    if not do_layer_norm_before:
        out = ln(out, params["final_ln_g"], params["final_ln_b"])
    return out


# --------------------------------------------------------------------------
# main
# --------------------------------------------------------------------------
if __name__ == "__main__":
    # Small but MXU/lane-aligned OPT-like config (Dh=128 keeps head slices
    # lane-dense; T=256 exercises Q/KV tiling + causal tile skipping).
    B, T, D, H = 2, 256, 256, 2
    FFN = 4 * D
    Dh = D // H

    key = jax.random.PRNGKey(0)
    keys = jax.random.split(key, 14)

    def winit(k, shape, scale=0.02):
        return (scale * jax.random.normal(k, shape)).astype(jnp.float32)

    params = {
        "q_w": winit(keys[0], (D, D)),   "q_b": winit(keys[1], (D,), 0.01),
        "k_w": winit(keys[2], (D, D)),   "k_b": winit(keys[3], (D,), 0.01),
        "v_w": winit(keys[4], (D, D)),   "v_b": winit(keys[5], (D,), 0.01),
        "o_w": winit(keys[6], (D, D)),   "o_b": winit(keys[7], (D,), 0.01),
        "fc1_w": winit(keys[8], (FFN, D)), "fc1_b": jnp.zeros((FFN,), jnp.float32),
        "fc2_w": winit(keys[9], (D, FFN)), "fc2_b": jnp.zeros((D,), jnp.float32),
        "attn_ln_g": 1.0 + winit(keys[10], (D,), 0.1),
        "attn_ln_b": winit(keys[11], (D,), 0.1),
        "final_ln_g": jnp.ones((D,), jnp.float32),
        "final_ln_b": jnp.zeros((D,), jnp.float32),
    }

    hidden_states = jax.random.normal(keys[12], (B, T, D), dtype=jnp.float32)

    # causal additive attention mask (B, 1, T, T) for the reference / fallback
    causal = jnp.tril(jnp.ones((T, T), jnp.float32))
    additive_mask = jnp.where(causal == 1.0, 0.0, -1e9).astype(jnp.float32)
    additive_mask = jnp.broadcast_to(additive_mask, (B, 1, T, T))

    packed = pack_params(params, num_heads=H, embed_dim=D)

    ref = _reference_forward(hidden_states, additive_mask, params,
                             num_heads=H, do_layer_norm_before=True)

    # 1) fast path: causal mask generated in-kernel (no HBM mask traffic)
    out = opt_decoder_layer_forward(hidden_states, None, packed,
                                    num_heads=H, do_layer_norm_before=True)
    out = jax.block_until_ready(out)
    assert out.shape == (B, T, D)
    assert bool(jnp.all(jnp.isfinite(out)))
    err = float(jnp.max(jnp.abs(out - ref)))
    assert err < 2e-2, f"causal path max abs err vs reference: {err}"

    # 2) fallback path: explicit additive attention mask streamed from HBM
    out_m = opt_decoder_layer_forward(hidden_states, additive_mask, packed,
                                      num_heads=H, do_layer_norm_before=True)
    out_m = jax.block_until_ready(out_m)
    err_m = float(jnp.max(jnp.abs(out_m - ref)))
    assert err_m < 2e-2, f"explicit-mask path max abs err vs reference: {err_m}"

    # 3) do_layer_norm_before=False path (post-residual LN fused into epilogue)
    ref_post = _reference_forward(hidden_states, additive_mask, params,
                                  num_heads=H, do_layer_norm_before=False)
    out_p = opt_decoder_layer_forward(hidden_states, None, packed,
                                      num_heads=H, do_layer_norm_before=False)
    out_p = jax.block_until_ready(out_p)
    err_p = float(jnp.max(jnp.abs(out_p - ref_post)))
    assert err_p < 2e-2, f"post-LN path max abs err vs reference: {err_p}"

    print("KERNEL_OK")
</pallas_src>

<mosaic_0001>
module attributes {stable_mosaic.version = 11 : i64} {
  func.func @_linear_fusedK_kernel(%arg0: i32, %arg1: i32, %arg2: memref<1x256xf32, #tpu.memory_space<vmem>>, %arg3: memref<1x256xf32, #tpu.memory_space<vmem>>, %arg4: memref<128x256xf32, #tpu.memory_space<vmem>>, %arg5: memref<256x256xbf16, #tpu.memory_space<vmem>>, %arg6: memref<1x256xf32, #tpu.memory_space<vmem>>, %arg7: memref<128x256xbf16, #tpu.memory_space<vmem>>, %arg8: memref<128x256xbf16, #tpu.memory_space<vmem>>) attributes {dimension_semantics = [#tpu.dimension_semantics<parallel>, #tpu.dimension_semantics<arbitrary>], iteration_bounds = array<i64: 4, 3>, scalar_prefetch = 0 : i64, scratch_operands = 1 : i64, tpu.core_type = #tpu.core_type<tc>, window_params = [{pipeline_mode = #tpu.pipeline_mode<synchronous>, transform_indices = @transform_0, window_bounds = array<i64: 1, 256>}, {pipeline_mode = #tpu.pipeline_mode<synchronous>, transform_indices = @transform_1, window_bounds = array<i64: 1, 256>}, {transform_indices = @transform_2, window_bounds = array<i64: 128, 256>}, {transform_indices = @transform_3, window_bounds = array<i64: 256, 256>}, {transform_indices = @transform_4, window_bounds = array<i64: 1, 256>}, {transform_indices = @transform_5, window_bounds = array<i64: 128, 256>}]} {
    %c0_i32 = arith.constant 0 : i32
    %0 = arith.cmpi eq, %arg1, %c0_i32 : i32
    %1 = arith.extui %0 : i1 to i32
    %c0_i32_0 = arith.constant 0 : i32
    %2 = arith.cmpi ne, %1, %c0_i32_0 : i32
    scf.if %2 {
      %c0_8 = arith.constant 0 : index
      %c0_9 = arith.constant 0 : index
      %11 = vector.load %arg4[%c0_8, %c0_9] : memref<128x256xf32, #tpu.memory_space<vmem>>, vector<128x256xf32>
      %cst_10 = arith.constant dense<0.000000e+00> : vector<128xf32>
      %12 = vector.multi_reduction <add>, %11, %cst_10 [1] : vector<128x256xf32> to vector<128xf32>
      %13 = vector.shape_cast %12 : vector<128xf32> to vector<128x1xf32>
      %cst_11 = arith.constant 2.560000e+02 : f32
      %14 = vector.broadcast %cst_11 : f32 to vector<128x1xf32>
      %15 = arith.divf %13, %14 : vector<128x1xf32>
      %16 = vector.broadcast %15 : vector<128x1xf32> to vector<128x256xf32>
      %17 = arith.subf %11, %16 : vector<128x256xf32>
      %18 = arith.mulf %17, %17 : vector<128x256xf32>
      %cst_12 = arith.constant dense<0.000000e+00> : vector<128xf32>
      %19 = vector.multi_reduction <add>, %18, %cst_12 [1] : vector<128x256xf32> to vector<128xf32>
      %20 = vector.shape_cast %19 : vector<128xf32> to vector<128x1xf32>
      %cst_13 = arith.constant 2.560000e+02 : f32
      %21 = vector.broadcast %cst_13 : f32 to vector<128x1xf32>
      %22 = arith.divf %20, %21 : vector<128x1xf32>
      %23 = vector.broadcast %15 : vector<128x1xf32> to vector<128x256xf32>
      %24 = arith.subf %11, %23 : vector<128x256xf32>
      %cst_14 = arith.constant 9.99999974E-6 : f32
      %25 = vector.broadcast %cst_14 : f32 to vector<128x1xf32>
      %26 = arith.addf %22, %25 : vector<128x1xf32>
      %27 = math.rsqrt %26 : vector<128x1xf32>
      %28 = vector.broadcast %27 : vector<128x1xf32> to vector<128x256xf32>
      %29 = arith.mulf %24, %28 : vector<128x256xf32>
      %c0_15 = arith.constant 0 : index
      %c0_16 = arith.constant 0 : index
      %30 = vector.load %arg2[%c0_15, %c0_16] : memref<1x256xf32, #tpu.memory_space<vmem>>, vector<1x256xf32>
      %31 = vector.broadcast %30 : vector<1x256xf32> to vector<128x256xf32>
      %32 = arith.mulf %29, %31 : vector<128x256xf32>
      %c0_17 = arith.constant 0 : index
      %c0_18 = arith.constant 0 : index
      %33 = vector.load %arg3[%c0_17, %c0_18] : memref<1x256xf32, #tpu.memory_space<vmem>>, vector<1x256xf32>
      %34 = vector.broadcast %33 : vector<1x256xf32> to vector<128x256xf32>
      %35 = arith.addf %32, %34 : vector<128x256xf32>
      %36 = arith.truncf %35 : vector<128x256xf32> to vector<128x256xbf16>
      %c0_19 = arith.constant 0 : index
      %c0_20 = arith.constant 0 : index
      %37 = vector.load %arg8[%c0_19, %c0_20] : memref<128x256xbf16, #tpu.memory_space<vmem>>, vector<128x256xbf16>
      tpu.vector_store %arg8[%c0_19, %c0_20], %36 {strides = array<i32>} : memref<128x256xbf16, #tpu.memory_space<vmem>>, vector<128x256xbf16>,
    } else {
    }
    %c0 = arith.constant 0 : index
    %c0_1 = arith.constant 0 : index
    %3 = vector.load %arg8[%c0, %c0_1] : memref<128x256xbf16, #tpu.memory_space<vmem>>, vector<128x256xbf16>
    %c0_2 = arith.constant 0 : index
    %c0_3 = arith.constant 0 : index
    %4 = vector.load %arg5[%c0_2, %c0_3] : memref<256x256xbf16, #tpu.memory_space<vmem>>, vector<256x256xbf16>
    %cst = arith.constant dense<0.000000e+00> : vector<128x256xf32>
    %5 = tpu.matmul %3, %4, %cst {dimension_numbers = #tpu.dot_dimension_numbers<[1], [0], [0], [1], [0, 0, 1, 1], [], []>} : vector<128x256xbf16>, vector<256x256xbf16>, vector<128x256xf32> -> vector<128x256xf32>
    %c0_4 = arith.constant 0 : index
    %c0_5 = arith.constant 0 : index
    %6 = vector.load %arg6[%c0_4, %c0_5] : memref<1x256xf32, #tpu.memory_space<vmem>>, vector<1x256xf32>
    %7 = vector.broadcast %6 : vector<1x256xf32> to vector<128x256xf32>
    %8 = arith.addf %5, %7 : vector<128x256xf32>
    %9 = arith.truncf %8 : vector<128x256xf32> to vector<128x256xbf16>
    %c0_6 = arith.constant 0 : index
    %c0_7 = arith.constant 0 : index
    %10 = vector.load %arg7[%c0_6, %c0_7] : memref<128x256xbf16, #tpu.memory_space<vmem>>, vector<128x256xbf16>
    tpu.vector_store %arg7[%c0_6, %c0_7], %9 {strides = array<i32>} : memref<128x256xbf16, #tpu.memory_space<vmem>>, vector<128x256xbf16>,
    return
  }
  func.func @transform_0(%arg0: i32, %arg1: i32) -> (i32, i32) {
    %c0_i32 = arith.constant 0 : i32
    %c0_i32_0 = arith.constant 0 : i32
    %c0_i32_1 = arith.constant 0 : i32
    return %c0_i32, %c0_i32_0 : i32, i32
  }
  func.func @transform_1(%arg0: i32, %arg1: i32) -> (i32, i32) {
    %c0_i32 = arith.constant 0 : i32
    %c0_i32_0 = arith.constant 0 : i32
    %c0_i32_1 = arith.constant 0 : i32
    return %c0_i32, %c0_i32_0 : i32, i32
  }
  func.func @transform_2(%arg0: i32, %arg1: i32) -> (i32, i32) {
    %c0_i32 = arith.constant 0 : i32
    %c0_i32_0 = arith.constant 0 : i32
    return %arg0, %c0_i32 : i32, i32
  }
  func.func @transform_3(%arg0: i32, %arg1: i32) -> (i32, i32) {
    %c0_i32 = arith.constant 0 : i32
    %c0_i32_0 = arith.constant 0 : i32
    return %c0_i32, %arg1 : i32, i32
  }
  func.func @transform_4(%arg0: i32, %arg1: i32) -> (i32, i32) {
    %c0_i32 = arith.constant 0 : i32
    %c0_i32_0 = arith.constant 0 : i32
    return %c0_i32, %arg1 : i32, i32
  }
  func.func @transform_5(%arg0: i32, %arg1: i32) -> (i32, i32) {
    %c0_i32 = arith.constant 0 : i32
    return %arg0, %arg1 : i32, i32
  }
}

</mosaic_0001>

<llo_original>
// kernel: tpu_custom_call.1
$region0: #{tpu_custom_call.1}
  #allocation0 [shape = 'u32[]', space=smem, size = 0x4, offset = 0x4, fixed_abs, tag = 'smem constant byte address 0x4 - core index']
  #allocation1 [shape = 'u32[144,128]{1,0:T(1,128)}', space=vmem, size = 0x12000, scoped, tag = 'internal scratch']
  #allocation2 [shape = 'bf16[128,256]{1,0:T(8,128)(2,1)}', space=vmem, size = 0x10000, scoped, tag = 'scratch operand']
  %s0 = inlined_call_operand.hbm [shape: f32[1,256], index: 0, kind: input, shape index: {}]
  %s1 = inlined_call_operand.hbm [shape: f32[1,256], index: 1, kind: input, shape index: {}]
  %s2 = inlined_call_operand.hbm [shape: f32[512,256], index: 2, kind: input, shape index: {}]
  %s3 = inlined_call_operand.hbm [shape: bf16[256,768], index: 3, kind: input, shape index: {}]
  %s4 = inlined_call_operand.vmem [shape: f32[1,768], index: 4, kind: input, shape index: {}]
  %s5 = inlined_call_operand.hbm [shape: bf16[512,768], index: 5, kind: output, shape index: {}]
  %s6 = sld [smem:[#allocation0]]
  $region73: #{tpu_custom_call.1} parent=0
    _
  %s8 = ssub.s32 1, %s6
  %s9 = scalar_select 0, %s8, %s6
  $region1: #{tpu_custom_call.1} parent=0
    #allocation3 [shape = 'u8[1024]{0}', space=vmem, size = 0x400, scoped, tag = 'input window, operand 0, single buffered']
    #allocation4 [shape = 's32[2]{0}', space=sflag, size = 0x8, scoped, tag = 'scoped memory for tpu_custom_call.1']
    #allocation5 [shape = 's32[2]{0}', space=sflag, size = 0x8, scoped, tag = 'scoped memory for tpu_custom_call.1']
    #allocation6 [shape = 'u8[1024]{0}', space=vmem, size = 0x400, scoped, tag = 'input window, operand 1, single buffered']
    #allocation7 [shape = 's32[1]{0}', space=sflag, size = 0x4, scoped, tag = 'scoped memory for tpu_custom_call.1']
    #allocation8 [shape = 'u8[262144]{0}', space=vmem, size = 0x40000, scoped, tag = 'input window, operand 2']
    #allocation9 [shape = 'u8[262144]{0}', space=vmem, size = 0x40000, scoped, tag = 'input window, operand 3']
    #allocation10 [shape = 'u8[131072]{0}', space=vmem, size = 0x20000, scoped, tag = 'output window, operand 0']
    %10 = vsyncpa [#allocation4], 0
    %11 = vsyncpa [#allocation7], 0
    %12 = vsyncpa [#allocation5], 0
    %s13 = scalar_lea.sflag [#allocation5], 1
    %14 = vsyncpa %s13, 0
    loop: start=0, step=1, limit=14
    $region2: #{tpu_custom_call.1} parent=1 // loop_pre_header
      _
    $region3: #{tpu_custom_call.1} parent=1 // loop_header
      %s16 = sphi 0, %s20
      %p17 = scmp.ge.s32.totalorder %s16, 14
      %s23 = sphi 0, %s35
      %s24 = sphi 0, %s31
      %s25 = sphi 0, %s23
      %s26 = sphi 0, %s24
      %s27 = sphi 0, %s25
      %s28 = sphi 0, %s26
      %s36 = sphi 0, %s36
      %s38 = sphi 0, %s36
      %s39 = sphi 0, %s38
      %s53 = sphi 0, %s39
      %s57 = sphi 0, %s57
      %s59 = sphi 0, %s57
      %s60 = sphi 0, %s59
      %s74 = sphi 0, %s60
      %s80 = sphi 0, %s82
      %s83 = sphi 0, %s80
      %s84 = sphi 0, %s83
      %s100 = sphi 0, %s84
      %s106 = sphi 0, %s108
      %s109 = sphi 0, %s106
      %s110 = sphi 0, %s109
      %s126 = sphi 0, %s110
      %s132 = sphi 0, %s134
      %s135 = sphi 0, %s132
      %s136 = sphi 0, %s135
      %s152 = sphi 0, %s136
      %s160 = sphi 0, %s162
      %s163 = sphi 0, %s160
      %s164 = sphi 0, %s163
      %s180 = sphi 0, %s164
    $region4: #{tpu_custom_call.1} parent=1 // loop_header_branch
      %19 = sbr.rel (%p17) target = $region8
    $region5: #{tpu_custom_call.1} parent=1 // loop_body
      %s21 = ssub.s32 %s16, 1
      %s22 = ssub.s32 %s16, 2
      %s29 = sadd.s32 1, %s24
      %p30 = scmp.ge.s32.totalorder %s29, 3
      %s31 = scalar_select %p30, 0, %s29
      %s32 = sadd.s32 1, %s23
      %s33 = scalar_select %p30, %s32, %s23
      %p34 = scmp.ge.s32.totalorder %s33, 4
      %s35 = scalar_select %p34, 0, %s33
      %s37 = sadd.s32 %s36, 1
      %p40 = scmp.eq.s32.totalorder %s16, 11
      %p41 = scmp.ne.s32.totalorder %s36, %s38
      %p42 = scmp.eq.s32.totalorder %s16, 0
      %p43 = por %p41, %p42
      %p44 = scmp.ne.s32.totalorder %s36, %s38
      %p45 = scmp.eq.s32.totalorder %s21, 11
      %p46 = por %p44, %p45
      %p47 = scmp.ne.s32.totalorder %s38, %s39
      %p48 = scmp.eq.s32.totalorder %s21, 0
      %p49 = por %p47, %p48
      %p50 = scmp.ne.s32.totalorder %s38, %s39
      %p51 = scmp.eq.s32.totalorder %s22, 11
      %p52 = por %p50, %p51
      %p54 = scmp.ne.s32.totalorder %s39, %s53
      %p55 = scmp.eq.s32.totalorder %s22, 0
      %p56 = por %p54, %p55
      %s58 = sadd.s32 %s57, 1
      %p61 = scmp.eq.s32.totalorder %s16, 11
      %p62 = scmp.ne.s32.totalorder %s57, %s59
      %p63 = scmp.eq.s32.totalorder %s16, 0
      %p64 = por %p62, %p63
      %p65 = scmp.ne.s32.totalorder %s57, %s59
      %p66 = scmp.eq.s32.totalorder %s21, 11
      %p67 = por %p65, %p66
      %p68 = scmp.ne.s32.totalorder %s59, %s60
      %p69 = scmp.eq.s32.totalorder %s21, 0
      %p70 = por %p68, %p69
      %p71 = scmp.ne.s32.totalorder %s59, %s60
      %p72 = scmp.eq.s32.totalorder %s22, 11
      %p73 = por %p71, %p72
      %p75 = scmp.ne.s32.totalorder %s60, %s74
      %p76 = scmp.eq.s32.totalorder %s22, 0
      %p77 = por %p75, %p76
      %s78 = ssub.s32 %s23, %s35
      %p79 = scmp.eq.s32.totalorder %s78, 0
      %s81 = sadd.s32 %s80, 1
      %s82 = scalar_select %p79, %s80, %s81
      %p85 = pneg %p79
      %p86 = scmp.eq.s32.totalorder %s16, 11
      %p87 = por %p85, %p86
      %p88 = scmp.ne.s32.totalorder %s80, %s83
      %p89 = scmp.eq.s32.totalorder %s16, 0
      %p90 = por %p88, %p89
      %p91 = scmp.ne.s32.totalorder %s80, %s83
      %p92 = scmp.eq.s32.totalorder %s21, 11
      %p93 = por %p91, %p92
      %p94 = scmp.ne.s32.totalorder %s83, %s84
      %p95 = scmp.eq.s32.totalorder %s21, 0
      %p96 = por %p94, %p95
      %p97 = scmp.ne.s32.totalorder %s83, %s84
      %p98 = scmp.eq.s32.totalorder %s22, 11
      %p99 = por %p97, %p98
      %p101 = scmp.ne.s32.totalorder %s84, %s100
      %p102 = scmp.eq.s32.totalorder %s22, 0
      %p103 = por %p101, %p102
      %s104 = ssub.s32 %s24, %s31
      %p105 = scmp.eq.s32.totalorder %s104, 0
      %s107 = sadd.s32 %s106, 1
      %s108 = scalar_select %p105, %s106, %s107
      %p111 = pneg %p105
      %p112 = scmp.eq.s32.totalorder %s16, 11
      %p113 = por %p111, %p112
      %p114 = scmp.ne.s32.totalorder %s106, %s109
      %p115 = scmp.eq.s32.totalorder %s16, 0
      %p116 = por %p114, %p115
      %p117 = scmp.ne.s32.totalorder %s106, %s109
      %p118 = scmp.eq.s32.totalorder %s21, 11
      %p119 = por %p117, %p118
      %p120 = scmp.ne.s32.totalorder %s109, %s110
      %p121 = scmp.eq.s32.totalorder %s21, 0
      %p122 = por %p120, %p121
      %p123 = scmp.ne.s32.totalorder %s109, %s110
      %p124 = scmp.eq.s32.totalorder %s22, 11
      %p125 = por %p123, %p124
      %p127 = scmp.ne.s32.totalorder %s110, %s126
      %p128 = scmp.eq.s32.totalorder %s22, 0
      %p129 = por %p127, %p128
      %s130 = ssub.s32 %s24, %s31
      %p131 = scmp.eq.s32.totalorder %s130, 0
      %s133 = sadd.s32 %s132, 1
      %s134 = scalar_select %p131, %s132, %s133
      %p137 = pneg %p131
      %p138 = scmp.eq.s32.totalorder %s16, 11
      %p139 = por %p137, %p138
      %p140 = scmp.ne.s32.totalorder %s132, %s135
      %p141 = scmp.eq.s32.totalorder %s16, 0
      %p142 = por %p140, %p141
      %p143 = scmp.ne.s32.totalorder %s132, %s135
      %p144 = scmp.eq.s32.totalorder %s21, 11
      %p145 = por %p143, %p144
      %p146 = scmp.ne.s32.totalorder %s135, %s136
      %p147 = scmp.eq.s32.totalorder %s21, 0
      %p148 = por %p146, %p147
      %p149 = scmp.ne.s32.totalorder %s135, %s136
      %p150 = scmp.eq.s32.totalorder %s22, 11
      %p151 = por %p149, %p150
      %p153 = scmp.ne.s32.totalorder %s136, %s152
      %p154 = scmp.eq.s32.totalorder %s22, 0
      %p155 = por %p153, %p154
      %s156 = ssub.s32 %s23, %s35
      %s157 = ssub.s32 %s24, %s31
      %s158 = sor.u32 %s156, %s157
      %p159 = scmp.eq.s32.totalorder %s158, 0
      %s161 = sadd.s32 %s160, 1
      %s162 = scalar_select %p159, %s160, %s161
      %p165 = pneg %p159
      %p166 = scmp.eq.s32.totalorder %s16, 11
      %p167 = por %p165, %p166
      %p168 = scmp.ne.s32.totalorder %s160, %s163
      %p169 = scmp.eq.s32.totalorder %s16, 0
      %p170 = por %p168, %p169
      %p171 = scmp.ne.s32.totalorder %s160, %s163
      %p172 = scmp.eq.s32.totalorder %s21, 11
      %p173 = por %p171, %p172
      %p174 = scmp.ne.s32.totalorder %s163, %s164
      %p175 = scmp.eq.s32.totalorder %s21, 0
      %p176 = por %p174, %p175
      %p177 = scmp.ne.s32.totalorder %s163, %s164
      %p178 = scmp.eq.s32.totalorder %s22, 11
      %p179 = por %p177, %p178
      %p181 = scmp.ne.s32.totalorder %s164, %s180
      %p182 = scmp.eq.s32.totalorder %s22, 0
      %p183 = por %p181, %p182
      %p184 = scmp.le.s32.totalorder 1, %s16
      %p185 = scmp.lt.s32.totalorder %s16, 13
      %p186 = pnand %p184, %p185
      %p187 = pneg %p186
      // Predicated region
      $region9: #{tpu_custom_call.1} parent=5 // pred_check
        _
      $region10: #{tpu_custom_call.1} parent=5 // pred_check_branch
        %189 = sbr.rel (%p186) target = $region12
      $region11: #{tpu_custom_call.1} parent=5 // pred_region
        %s190 = ssub.s32 %s16, 1
        // Predicated region
        $region13: #{tpu_custom_call.1} parent=11 // pred_check
          %p191 = pneg %p49
        $region14: #{tpu_custom_call.1} parent=11 // pred_check_branch
          %193 = sbr.rel (%p191) target = $region16
        $region15: #{tpu_custom_call.1} parent=11 // pred_region
          %s195 = ssub.s32 32, 32
          %196 = vsyncadd [#allocation4], %s195
          %s198 = sshll.u32 [#allocation3], 4
          %s199 = int_to_ptr.vmem [resolvable:$true] %s198
          %201 = dma.hbm_to_vmem [thread:$0]  %s0, 32, %s199, [#allocation4]
        $region16: #{tpu_custom_call.1} parent=11 // pred_fallthru
          _
        // Predicated region
        $region17: #{tpu_custom_call.1} parent=11 // pred_check
          %p202 = pneg %p70
        $region18: #{tpu_custom_call.1} parent=11 // pred_check_branch
          %204 = sbr.rel (%p202) target = $region20
        $region19: #{tpu_custom_call.1} parent=11 // pred_region
          %s206 = ssub.s32 32, 32
          %207 = vsyncadd [#allocation7], %s206
          %s209 = sshll.u32 [#allocation6], 4
          %s210 = int_to_ptr.vmem [resolvable:$true] %s209
          %212 = dma.hbm_to_vmem [thread:$0]  %s1, 32, %s210, [#allocation7]
        $region20: #{tpu_custom_call.1} parent=11 // pred_fallthru
          _
      $region12: #{tpu_custom_call.1} parent=5 // pred_fallthru
        _
      %p213 = scmp.lt.s32.totalorder %s16, 12
      // Predicated region
      $region21: #{tpu_custom_call.1} parent=5 // pred_check
        %p214 = pneg %p213
      $region22: #{tpu_custom_call.1} parent=5 // pred_check_branch
        %216 = sbr.rel (%p214) target = $region24
      $region23: #{tpu_custom_call.1} parent=5 // pred_region
        // Predicated region
        $region25: #{tpu_custom_call.1} parent=23 // pred_check
          %p217 = pneg %p90
        $region26: #{tpu_custom_call.1} parent=23 // pred_check_branch
          %219 = sbr.rel (%p217) target = $region28
        $region27: #{tpu_custom_call.1} parent=23 // pred_region
          %s220 = sand.u32 %s16, 1
          %s221 = scalar_lea.sflag [#allocation4], %s220
          %s222 = sand.u32 %s80, 1
          %s223 = smul.addr %s222, 256
          %s224 = scalar_lea.vmem [#allocation8], %s223
          %s225 = smul.u32 16, %s23
          %s227 = ssub.s32 4096, 4096
          %228 = vsyncadd %s221, %s227
          %s229 = smul.addr %s225, 2
          %s230 = smul.addr %s229, 128
          %s231 = scalar_lea.hbm %s2, %s230
          %s232 = sshll.u32 %s224, 4
          %s233 = int_to_ptr.vmem [resolvable:$true] %s232
          %238 = dma.hbm_to_vmem [thread:$0]  %s231, 4096, %s233, %s221, 256, 256, 16
        $region28: #{tpu_custom_call.1} parent=23 // pred_fallthru
          _
        // Predicated region
        $region29: #{tpu_custom_call.1} parent=23 // pred_check
          %p239 = pneg %p116
        $region30: #{tpu_custom_call.1} parent=23 // pred_check_branch
          %241 = sbr.rel (%p239) target = $region32
        $region31: #{tpu_custom_call.1} parent=23 // pred_region
          %s242 = sand.u32 %s16, 1
          %s243 = scalar_lea.sflag [#allocation4], %s242
          %s244 = sand.u32 %s106, 1
          %s245 = smul.addr %s244, 256
          %s246 = scalar_lea.vmem [#allocation9], %s245
          %s247 = smul.u32 2, %s24
          %s249 = ssub.s32 4096, 4096
          %250 = vsyncadd %s243, %s249
          %s251 = smul.addr %s247, 64
          %s252 = scalar_lea.hbm %s3, %s251
          %s253 = sshll.u32 %s246, 4
          %s254 = int_to_ptr.vmem [resolvable:$true] %s253
          %259 = dma.hbm_to_vmem [thread:$0]  %s252, 4096, %s254, %s243, 384, 128, 8
        $region32: #{tpu_custom_call.1} parent=23 // pred_fallthru
          _
        // Predicated region
        $region33: #{tpu_custom_call.1} parent=23 // pred_check
          %p260 = pneg %p142
        $region34: #{tpu_custom_call.1} parent=23 // pred_check_branch
          %262 = sbr.rel (%p260) target = $region36
        $region35: #{tpu_custom_call.1} parent=23 // pred_region
          %s263 = smul.u32 2, %s24
          %p264 = scmp.lt.s32.totalorder %s263, 5
          %s265 = scalar_select %p264, %s263, 5
          %s266 = scalar_lea.vmem %s4, %s265
          %s267 = smul.u32 2, %s24
        $region36: #{tpu_custom_call.1} parent=23 // pred_fallthru
          _
      $region24: #{tpu_custom_call.1} parent=5 // pred_fallthru
        _
      %p268 = scmp.le.s32.totalorder 1, %s16
      %p269 = scmp.lt.s32.totalorder %s16, 13
      %p270 = pnand %p268, %p269
      %p271 = pneg %p270
      // Predicated region
      $region37: #{tpu_custom_call.1} parent=5 // pred_check
        _
      $region38: #{tpu_custom_call.1} parent=5 // pred_check_branch
        %273 = sbr.rel (%p270) target = $region40
      $region39: #{tpu_custom_call.1} parent=5 // pred_region
        %s274 = ssub.s32 %s16, 1
        // Predicated region
        $region41: #{tpu_custom_call.1} parent=39 // pred_check
          %p275 = pneg %p49
        $region42: #{tpu_custom_call.1} parent=39 // pred_check_branch
          %277 = sbr.rel (%p275) target = $region44
        $region43: #{tpu_custom_call.1} parent=39 // pred_region
          %278 = dma.done [#allocation4], 32
        $region44: #{tpu_custom_call.1} parent=39 // pred_fallthru
          _
        // Predicated region
        $region45: #{tpu_custom_call.1} parent=39 // pred_check
          %p279 = pneg %p70
        $region46: #{tpu_custom_call.1} parent=39 // pred_check_branch
          %281 = sbr.rel (%p279) target = $region48
        $region47: #{tpu_custom_call.1} parent=39 // pred_region
          %282 = dma.done [#allocation7], 32
        $region48: #{tpu_custom_call.1} parent=39 // pred_fallthru
          _
        %s283 = sand.u32 %s21, 1
        %s284 = scalar_lea.sflag [#allocation4], %s283
        %s285 = sand.u32 %s83, 1
        %s286 = smul.addr %s285, 256
        %s287 = scalar_lea.vmem [#allocation8], %s286
        // Predicated region
        $region49: #{tpu_custom_call.1} parent=39 // pred_check
          %p288 = pneg %p96
        $region50: #{tpu_custom_call.1} parent=39 // pred_check_branch
          %290 = sbr.rel (%p288) target = $region52
        $region51: #{tpu_custom_call.1} parent=39 // pred_region
          %291 = dma.done %s284, 4096
        $region52: #{tpu_custom_call.1} parent=39 // pred_fallthru
          _
        %s292 = sand.u32 %s21, 1
        %s293 = scalar_lea.sflag [#allocation4], %s292
        %s294 = sand.u32 %s109, 1
        %s295 = smul.addr %s294, 256
        %s296 = scalar_lea.vmem [#allocation9], %s295
        // Predicated region
        $region53: #{tpu_custom_call.1} parent=39 // pred_check
          %p297 = pneg %p122
        $region54: #{tpu_custom_call.1} parent=39 // pred_check_branch
          %299 = sbr.rel (%p297) target = $region56
        $region55: #{tpu_custom_call.1} parent=39 // pred_region
          %300 = dma.done %s293, 4096
        $region56: #{tpu_custom_call.1} parent=39 // pred_fallthru
          _
        %p301 = pneg %p49
        %p302 = pneg %p46
        %p303 = pneg %p70
        %p304 = pneg %p67
        %s305 = sand.u32 %s21, 1
        %s306 = scalar_lea.sflag [#allocation4], %s305
        %s307 = sand.u32 %s83, 1
        %s308 = smul.addr %s307, 256
        %s309 = scalar_lea.vmem [#allocation8], %s308
        %p310 = pneg %p96
        %p311 = pneg %p93
        %s312 = sand.u32 %s21, 1
        %s313 = scalar_lea.sflag [#allocation4], %s312
        %s314 = sand.u32 %s109, 1
        %s315 = smul.addr %s314, 256
        %s316 = scalar_lea.vmem [#allocation9], %s315
        %p317 = pneg %p122
        %p318 = pneg %p119
        %s319 = smul.u32 2, %s26
        %p320 = scmp.lt.s32.totalorder %s319, 5
        %s321 = scalar_select %p320, %s319, 5
        %s322 = scalar_lea.vmem %s4, %s321
        %p323 = pneg %p148
        %p324 = pneg %p145
        %p325 = pneg %p176
        %p326 = pneg %p173
        %s327 = sand.u32 %s163, 1
        %s328 = scalar_lea.sflag [#allocation5], %s327
        %s329 = sand.u32 %s163, 1
        %s330 = smul.addr %s329, 128
        %s331 = scalar_lea.vmem [#allocation10], %s330
        %s332 = smul.u32 16, %s25
        %s333 = smul.u32 2, %s26
        %s334 = smul.u32 2, %s26
        %p335 = scmp.lt.s32.totalorder %s334, 5
        %s336 = scalar_select %p335, %s334, 5
        %s337 = scalar_lea.vmem %s4, %s336
        %s338 = smul.u32 2, %s26
        %s339 = smul.u32 16, %s25
        %s340 = smul.u32 2, %s26
        %p341 = scmp.eq.s32.totalorder %s26, 0
        // Predicated region
        $region57: #{tpu_custom_call.1} parent=39 // pred_check
          %p342 = pneg %p341
        $region58: #{tpu_custom_call.1} parent=39 // pred_check_branch
          %344 = sbr.rel (%p342) target = $region60
        $region59: #{tpu_custom_call.1} parent=39 // pred_region
          %v345 = vld [vmem:[%s287] sm:$0xff]
          %v346 = vld [vmem:[%s287 + $0x8] sm:$0xff]
          %v347 = vld [vmem:[%s287 + $0x10] sm:$0xff]
          %v348 = vld [vmem:[%s287 + $0x18] sm:$0xff]
          %v349 = vld [vmem:[%s287 + $0x20] sm:$0xff]
          %v350 = vld [vmem:[%s287 + $0x28] sm:$0xff]
          %v351 = vld [vmem:[%s287 + $0x30] sm:$0xff]
          %v352 = vld [vmem:[%s287 + $0x38] sm:$0xff]
          %v353 = vld [vmem:[%s287 + $0x40] sm:$0xff]
          %v354 = vld [vmem:[%s287 + $0x48] sm:$0xff]
          %v355 = vld [vmem:[%s287 + $0x50] sm:$0xff]
          %v356 = vld [vmem:[%s287 + $0x58] sm:$0xff]
          %v357 = vld [vmem:[%s287 + $0x60] sm:$0xff]
          %v358 = vld [vmem:[%s287 + $0x68] sm:$0xff]
          %v359 = vld [vmem:[%s287 + $0x70] sm:$0xff]
          %v360 = vld [vmem:[%s287 + $0x78] sm:$0xff]
          %v361 = vld [vmem:[%s287 + $0x80] sm:$0xff]
          %v362 = vld [vmem:[%s287 + $0x88] sm:$0xff]
          %v363 = vld [vmem:[%s287 + $0x90] sm:$0xff]
          %v364 = vld [vmem:[%s287 + $0x98] sm:$0xff]
          %v365 = vld [vmem:[%s287 + $0xa0] sm:$0xff]
          %v366 = vld [vmem:[%s287 + $0xa8] sm:$0xff]
          %v367 = vld [vmem:[%s287 + $0xb0] sm:$0xff]
          %v368 = vld [vmem:[%s287 + $0xb8] sm:$0xff]
          %v369 = vld [vmem:[%s287 + $0xc0] sm:$0xff]
          %v370 = vld [vmem:[%s287 + $0xc8] sm:$0xff]
          %v371 = vld [vmem:[%s287 + $0xd0] sm:$0xff]
          %v372 = vld [vmem:[%s287 + $0xd8] sm:$0xff]
          %v373 = vld [vmem:[%s287 + $0xe0] sm:$0xff]
          %v374 = vld [vmem:[%s287 + $0xe8] sm:$0xff]
          %v375 = vld [vmem:[%s287 + $0xf0] sm:$0xff]
          %v376 = vld [vmem:[%s287 + $0xf8] sm:$0xff]
          %v377 = vadd.f32 %v345, %v346
          %378 = vadd.xlane.f32.xlu0 %v377
          %v379 = vpop.xlane.xlu0 %378
          %v380 = vadd.f32 %v347, %v348
          %381 = vadd.xlane.f32.xlu0 %v380
          %v382 = vpop.xlane.xlu0 %381
          %v383 = vadd.f32 %v349, %v350
          %384 = vadd.xlane.f32.xlu0 %v383
          %v385 = vpop.xlane.xlu0 %384
          %v386 = vadd.f32 %v351, %v352
          %387 = vadd.xlane.f32.xlu0 %v386
          %v388 = vpop.xlane.xlu0 %387
          %v389 = vadd.f32 %v353, %v354
          %390 = vadd.xlane.f32.xlu0 %v389
          %v391 = vpop.xlane.xlu0 %390
          %v392 = vadd.f32 %v355, %v356
          %393 = vadd.xlane.f32.xlu0 %v392
          %v394 = vpop.xlane.xlu0 %393
          %v395 = vadd.f32 %v357, %v358
          %396 = vadd.xlane.f32.xlu0 %v395
          %v397 = vpop.xlane.xlu0 %396
          %v398 = vadd.f32 %v359, %v360
          %399 = vadd.xlane.f32.xlu0 %v398
          %v400 = vpop.xlane.xlu0 %399
          %v401 = vadd.f32 %v361, %v362
          %402 = vadd.xlane.f32.xlu0 %v401
          %v403 = vpop.xlane.xlu0 %402
          %v404 = vadd.f32 %v363, %v364
          %405 = vadd.xlane.f32.xlu0 %v404
          %v406 = vpop.xlane.xlu0 %405
          %v407 = vadd.f32 %v365, %v366
          %408 = vadd.xlane.f32.xlu0 %v407
          %v409 = vpop.xlane.xlu0 %408
          %v410 = vadd.f32 %v367, %v368
          %411 = vadd.xlane.f32.xlu0 %v410
          %v412 = vpop.xlane.xlu0 %411
          %v413 = vadd.f32 %v369, %v370
          %414 = vadd.xlane.f32.xlu0 %v413
          %v415 = vpop.xlane.xlu0 %414
          %v416 = vadd.f32 %v371, %v372
          %417 = vadd.xlane.f32.xlu0 %v416
          %v418 = vpop.xlane.xlu0 %417
          %v419 = vadd.f32 %v373, %v374
          %420 = vadd.xlane.f32.xlu0 %v419
          %v421 = vpop.xlane.xlu0 %420
          %v422 = vadd.f32 %v375, %v376
          %423 = vadd.xlane.f32.xlu0 %v422
          %v424 = vpop.xlane.xlu0 %423
          %v425 = vrcp.pop 256.0
          %v426 = vmul.f32 %v379, %v425
          %v427 = vmul.f32 %v382, %v425
          %v428 = vmul.f32 %v385, %v425
          %v429 = vmul.f32 %v388, %v425
          %v430 = vmul.f32 %v391, %v425
          %v431 = vmul.f32 %v394, %v425
          %v432 = vmul.f32 %v397, %v425
          %v433 = vmul.f32 %v400, %v425
          %v434 = vmul.f32 %v403, %v425
          %v435 = vmul.f32 %v406, %v425
          %v436 = vmul.f32 %v409, %v425
          %v437 = vmul.f32 %v412, %v425
          %v438 = vmul.f32 %v415, %v425
          %v439 = vmul.f32 %v418, %v425
          %v440 = vmul.f32 %v421, %v425
          %v441 = vmul.f32 %v424, %v425
          %v442 = vsub.f32 %v345, %v426
          %v443 = vsub.f32 %v346, %v426
          %v444 = vsub.f32 %v347, %v427
          %v445 = vsub.f32 %v348, %v427
          %v446 = vsub.f32 %v349, %v428
          %v447 = vsub.f32 %v350, %v428
          %v448 = vsub.f32 %v351, %v429
          %v449 = vsub.f32 %v352, %v429
          %v450 = vsub.f32 %v353, %v430
          %v451 = vsub.f32 %v354, %v430
          %v452 = vsub.f32 %v355, %v431
          %v453 = vsub.f32 %v356, %v431
          %v454 = vsub.f32 %v357, %v432
          %v455 = vsub.f32 %v358, %v432
          %v456 = vsub.f32 %v359, %v433
          %v457 = vsub.f32 %v360, %v433
          %v458 = vsub.f32 %v361, %v434
          %v459 = vsub.f32 %v362, %v434
          %v460 = vsub.f32 %v363, %v435
          %v461 = vsub.f32 %v364, %v435
          %v462 = vsub.f32 %v365, %v436
          %v463 = vsub.f32 %v366, %v436
          %v464 = vsub.f32 %v367, %v437
          %v465 = vsub.f32 %v368, %v437
          %v466 = vsub.f32 %v369, %v438
          %v467 = vsub.f32 %v370, %v438
          %v468 = vsub.f32 %v371, %v439
          %v469 = vsub.f32 %v372, %v439
          %v470 = vsub.f32 %v373, %v440
          %v471 = vsub.f32 %v374, %v440
          %v472 = vsub.f32 %v375, %v441
          %v473 = vsub.f32 %v376, %v441
          %v474 = vmul.f32 %v442, %v442
          %v475 = vmul.f32 %v443, %v443
          %v476 = vmul.f32 %v444, %v444
          %v477 = vmul.f32 %v445, %v445
          %v478 = vmul.f32 %v446, %v446
          %v479 = vmul.f32 %v447, %v447
          %v480 = vmul.f32 %v448, %v448
          %v481 = vmul.f32 %v449, %v449
          %v482 = vmul.f32 %v450, %v450
          %v483 = vmul.f32 %v451, %v451
          %v484 = vmul.f32 %v452, %v452
          %v485 = vmul.f32 %v453, %v453
          %v486 = vmul.f32 %v454, %v454
          %v487 = vmul.f32 %v455, %v455
          %v488 = vmul.f32 %v456, %v456
          %v489 = vmul.f32 %v457, %v457
          %v490 = vmul.f32 %v458, %v458
          %v491 = vmul.f32 %v459, %v459
          %v492 = vmul.f32 %v460, %v460
          %v493 = vmul.f32 %v461, %v461
          %v494 = vmul.f32 %v462, %v462
          %v495 = vmul.f32 %v463, %v463
          %v496 = vmul.f32 %v464, %v464
          %v497 = vmul.f32 %v465, %v465
          %v498 = vmul.f32 %v466, %v466
          %v499 = vmul.f32 %v467, %v467
          %v500 = vmul.f32 %v468, %v468
          %v501 = vmul.f32 %v469, %v469
          %v502 = vmul.f32 %v470, %v470
          %v503 = vmul.f32 %v471, %v471
          %v504 = vmul.f32 %v472, %v472
          %v505 = vmul.f32 %v473, %v473
          %v506 = vadd.f32 %v474, %v475
          %507 = vadd.xlane.f32.xlu0 %v506
          %v508 = vpop.xlane.xlu0 %507
          %v509 = vadd.f32 %v476, %v477
          %510 = vadd.xlane.f32.xlu0 %v509
          %v511 = vpop.xlane.xlu0 %510
          %v512 = vadd.f32 %v478, %v479
          %513 = vadd.xlane.f32.xlu0 %v512
          %v514 = vpop.xlane.xlu0 %513
          %v515 = vadd.f32 %v480, %v481
          %516 = vadd.xlane.f32.xlu0 %v515
          %v517 = vpop.xlane.xlu0 %516
          %v518 = vadd.f32 %v482, %v483
          %519 = vadd.xlane.f32.xlu0 %v518
          %v520 = vpop.xlane.xlu0 %519
          %v521 = vadd.f32 %v484, %v485
          %522 = vadd.xlane.f32.xlu0 %v521
          %v523 = vpop.xlane.xlu0 %522
          %v524 = vadd.f32 %v486, %v487
          %525 = vadd.xlane.f32.xlu0 %v524
          %v526 = vpop.xlane.xlu0 %525
          %v527 = vadd.f32 %v488, %v489
          %528 = vadd.xlane.f32.xlu0 %v527
          %v529 = vpop.xlane.xlu0 %528
          %v530 = vadd.f32 %v490, %v491
          %531 = vadd.xlane.f32.xlu0 %v530
          %v532 = vpop.xlane.xlu0 %531
          %v533 = vadd.f32 %v492, %v493
          %534 = vadd.xlane.f32.xlu0 %v533
          %v535 = vpop.xlane.xlu0 %534
          %v536 = vadd.f32 %v494, %v495
          %537 = vadd.xlane.f32.xlu0 %v536
          %v538 = vpop.xlane.xlu0 %537
          %v539 = vadd.f32 %v496, %v497
          %540 = vadd.xlane.f32.xlu0 %v539
          %v541 = vpop.xlane.xlu0 %540
          %v542 = vadd.f32 %v498, %v499
          %543 = vadd.xlane.f32.xlu0 %v542
          %v544 = vpop.xlane.xlu0 %543
          %v545 = vadd.f32 %v500, %v501
          %546 = vadd.xlane.f32.xlu0 %v545
          %v547 = vpop.xlane.xlu0 %546
          %v548 = vadd.f32 %v502, %v503
          %549 = vadd.xlane.f32.xlu0 %v548
          %v550 = vpop.xlane.xlu0 %549
          %v551 = vadd.f32 %v504, %v505
          %552 = vadd.xlane.f32.xlu0 %v551
          %v553 = vpop.xlane.xlu0 %552
          %v554 = vmul.f32 %v508, %v425
          %v555 = vmul.f32 %v511, %v425
          %v556 = vmul.f32 %v514, %v425
          %v557 = vmul.f32 %v517, %v425
          %v558 = vmul.f32 %v520, %v425
          %v559 = vmul.f32 %v523, %v425
          %v560 = vmul.f32 %v526, %v425
          %v561 = vmul.f32 %v529, %v425
          %v562 = vmul.f32 %v532, %v425
          %v563 = vmul.f32 %v535, %v425
          %v564 = vmul.f32 %v538, %v425
          %v565 = vmul.f32 %v541, %v425
          %v566 = vmul.f32 %v544, %v425
          %v567 = vmul.f32 %v547, %v425
          %v568 = vmul.f32 %v550, %v425
          %v569 = vmul.f32 %v553, %v425
          %v570 = vadd.f32 %v554, 1e-05
          %v571 = vadd.f32 %v555, 1e-05
          %v572 = vadd.f32 %v556, 1e-05
          %v573 = vadd.f32 %v557, 1e-05
          %v574 = vadd.f32 %v558, 1e-05
          %v575 = vadd.f32 %v559, 1e-05
          %v576 = vadd.f32 %v560, 1e-05
          %v577 = vadd.f32 %v561, 1e-05
          %v578 = vadd.f32 %v562, 1e-05
          %v579 = vadd.f32 %v563, 1e-05
          %v580 = vadd.f32 %v564, 1e-05
          %v581 = vadd.f32 %v565, 1e-05
          %v582 = vadd.f32 %v566, 1e-05
          %v583 = vadd.f32 %v567, 1e-05
          %v584 = vadd.f32 %v568, 1e-05
          %v585 = vadd.f32 %v569, 1e-05
          %v586 = vrsqrt.pop %v570
          %v587 = vrsqrt.pop %v571
          %v588 = vrsqrt.pop %v572
          %v589 = vrsqrt.pop %v573
          %v590 = vrsqrt.pop %v574
          %v591 = vrsqrt.pop %v575
          %v592 = vrsqrt.pop %v576
          %v593 = vrsqrt.pop %v577
          %v594 = vrsqrt.pop %v578
          %v595 = vrsqrt.pop %v579
          %v596 = vrsqrt.pop %v580
          %v597 = vrsqrt.pop %v581
          %v598 = vrsqrt.pop %v582
          %v599 = vrsqrt.pop %v583
          %v600 = vrsqrt.pop %v584
          %v601 = vrsqrt.pop %v585
          %v602 = vmul.f32 %v442, %v586
          %v603 = vmul.f32 %v443, %v586
          %v604 = vmul.f32 %v444, %v587
          %v605 = vmul.f32 %v445, %v587
          %v606 = vmul.f32 %v446, %v588
          %v607 = vmul.f32 %v447, %v588
          %v608 = vmul.f32 %v448, %v589
          %v609 = vmul.f32 %v449, %v589
          %v610 = vmul.f32 %v450, %v590
          %v611 = vmul.f32 %v451, %v590
          %v612 = vmul.f32 %v452, %v591
          %v613 = vmul.f32 %v453, %v591
          %v614 = vmul.f32 %v454, %v592
          %v615 = vmul.f32 %v455, %v592
          %v616 = vmul.f32 %v456, %v593
          %v617 = vmul.f32 %v457, %v593
          %v618 = vmul.f32 %v458, %v594
          %v619 = vmul.f32 %v459, %v594
          %v620 = vmul.f32 %v460, %v595
          %v621 = vmul.f32 %v461, %v595
          %v622 = vmul.f32 %v462, %v596
          %v623 = vmul.f32 %v463, %v596
          %v624 = vmul.f32 %v464, %v597
          %v625 = vmul.f32 %v465, %v597
          %v626 = vmul.f32 %v466, %v598
          %v627 = vmul.f32 %v467, %v598
          %v628 = vmul.f32 %v468, %v599
          %v629 = vmul.f32 %v469, %v599
          %v630 = vmul.f32 %v470, %v600
          %v631 = vmul.f32 %v471, %v600
          %v632 = vmul.f32 %v472, %v601
          %v633 = vmul.f32 %v473, %v601
          %v634 = vld [vmem:[#allocation3] sm:$0x3]
          %v636 = vlaneseq
          %v637 = vshrl.u32 %v636, 7
          %v638 = vsub.s32 0, %v637
          %v639 = vrot.slane %v634, %v638
          %v640 = vlaneseq
          %v641 = vshrl.u32 %v640, 7
          %v642 = vsub.s32 1, %v641
          %v643 = vrot.slane %v634, %v642
          %v646 = vmul.f32 %v602, %v639
          %v647 = vmul.f32 %v603, %v643
          %v648 = vmul.f32 %v604, %v639
          %v649 = vmul.f32 %v605, %v643
          %v650 = vmul.f32 %v606, %v639
          %v651 = vmul.f32 %v607, %v643
          %v652 = vmul.f32 %v608, %v639
          %v653 = vmul.f32 %v609, %v643
          %v654 = vmul.f32 %v610, %v639
          %v655 = vmul.f32 %v611, %v643
          %v656 = vmul.f32 %v612, %v639
          %v657 = vmul.f32 %v613, %v643
          %v658 = vmul.f32 %v614, %v639
          %v659 = vmul.f32 %v615, %v643
          %v660 = vmul.f32 %v616, %v639
          %v661 = vmul.f32 %v617, %v643
          %v662 = vmul.f32 %v618, %v639
          %v663 = vmul.f32 %v619, %v643
          %v664 = vmul.f32 %v620, %v639
          %v665 = vmul.f32 %v621, %v643
          %v666 = vmul.f32 %v622, %v639
          %v667 = vmul.f32 %v623, %v643
          %v668 = vmul.f32 %v624, %v639
          %v669 = vmul.f32 %v625, %v643
          %v670 = vmul.f32 %v626, %v639
          %v671 = vmul.f32 %v627, %v643
          %v672 = vmul.f32 %v628, %v639
          %v673 = vmul.f32 %v629, %v643
          %v674 = vmul.f32 %v630, %v639
          %v675 = vmul.f32 %v631, %v643
          %v676 = vmul.f32 %v632, %v639
          %v677 = vmul.f32 %v633, %v643
          %v678 = vld [vmem:[#allocation6] sm:$0x3]
          %v680 = vlaneseq
          %v681 = vshrl.u32 %v680, 7
          %v682 = vsub.s32 0, %v681
          %v683 = vrot.slane %v678, %v682
          %v684 = vlaneseq
          %v685 = vshrl.u32 %v684, 7
          %v686 = vsub.s32 1, %v685
          %v687 = vrot.slane %v678, %v686
          %v690 = vadd.f32 %v646, %v683
          %v691 = vadd.f32 %v647, %v687
          %v692 = vadd.f32 %v648, %v683
          %v693 = vadd.f32 %v649, %v687
          %v694 = vadd.f32 %v650, %v683
          %v695 = vadd.f32 %v651, %v687
          %v696 = vadd.f32 %v652, %v683
          %v697 = vadd.f32 %v653, %v687
          %v698 = vadd.f32 %v654, %v683
          %v699 = vadd.f32 %v655, %v687
          %v700 = vadd.f32 %v656, %v683
          %v701 = vadd.f32 %v657, %v687
          %v702 = vadd.f32 %v658, %v683
          %v703 = vadd.f32 %v659, %v687
          %v704 = vadd.f32 %v660, %v683
          %v705 = vadd.f32 %v661, %v687
          %v706 = vadd.f32 %v662, %v683
          %v707 = vadd.f32 %v663, %v687
          %v708 = vadd.f32 %v664, %v683
          %v709 = vadd.f32 %v665, %v687
          %v710 = vadd.f32 %v666, %v683
          %v711 = vadd.f32 %v667, %v687
          %v712 = vadd.f32 %v668, %v683
          %v713 = vadd.f32 %v669, %v687
          %v714 = vadd.f32 %v670, %v683
          %v715 = vadd.f32 %v671, %v687
          %v716 = vadd.f32 %v672, %v683
          %v717 = vadd.f32 %v673, %v687
          %v718 = vadd.f32 %v674, %v683
          %v719 = vadd.f32 %v675, %v687
          %v720 = vadd.f32 %v676, %v683
          %v721 = vadd.f32 %v677, %v687
          %v722 = vpack.c.bf16 %v692, %v690
          %v723 = vpack.c.bf16 %v693, %v691
          %v724 = vpack.c.bf16 %v696, %v694
          %v725 = vpack.c.bf16 %v697, %v695
          %v726 = vpack.c.bf16 %v700, %v698
          %v727 = vpack.c.bf16 %v701, %v699
          %v728 = vpack.c.bf16 %v704, %v702
          %v729 = vpack.c.bf16 %v705, %v703
          %v730 = vpack.c.bf16 %v708, %v706
          %v731 = vpack.c.bf16 %v709, %v707
          %v732 = vpack.c.bf16 %v712, %v710
          %v733 = vpack.c.bf16 %v713, %v711
          %v734 = vpack.c.bf16 %v716, %v714
          %v735 = vpack.c.bf16 %v717, %v715
          %v736 = vpack.c.bf16 %v720, %v718
          %v737 = vpack.c.bf16 %v721, %v719
          %v754 = vunpack.c.l.b16 %v722
          %v755 = vunpack.c.l.b16 %v723
          %v756 = vunpack.c.h.b16 %v722
          %v757 = vunpack.c.h.b16 %v723
          %v758 = vunpack.c.l.b16 %v724
          %v759 = vunpack.c.l.b16 %v725
          %v760 = vunpack.c.h.b16 %v724
          %v761 = vunpack.c.h.b16 %v725
          %v762 = vunpack.c.l.b16 %v726
          %v763 = vunpack.c.l.b16 %v727
          %v764 = vunpack.c.h.b16 %v726
          %v765 = vunpack.c.h.b16 %v727
          %v766 = vunpack.c.l.b16 %v728
          %v767 = vunpack.c.l.b16 %v729
          %v768 = vunpack.c.h.b16 %v728
          %v769 = vunpack.c.h.b16 %v729
          %v770 = vunpack.c.l.b16 %v730
          %v771 = vunpack.c.l.b16 %v731
          %v772 = vunpack.c.h.b16 %v730
          %v773 = vunpack.c.h.b16 %v731
          %v774 = vunpack.c.l.b16 %v732
          %v775 = vunpack.c.l.b16 %v733
          %v776 = vunpack.c.h.b16 %v732
          %v777 = vunpack.c.h.b16 %v733
          %v778 = vunpack.c.l.b16 %v734
          %v779 = vunpack.c.l.b16 %v735
          %v780 = vunpack.c.h.b16 %v734
          %v781 = vunpack.c.h.b16 %v735
          %v782 = vunpack.c.l.b16 %v736
          %v783 = vunpack.c.l.b16 %v737
          %v784 = vunpack.c.h.b16 %v736
          %v785 = vunpack.c.h.b16 %v737
          %v786 = vpack.c.b16 %v755, %v754
          %v787 = vpack.c.b16 %v757, %v756
          %v788 = vpack.c.b16 %v759, %v758
          %v789 = vpack.c.b16 %v761, %v760
          %v790 = vpack.c.b16 %v763, %v762
          %v791 = vpack.c.b16 %v765, %v764
          %v792 = vpack.c.b16 %v767, %v766
          %v793 = vpack.c.b16 %v769, %v768
          %v794 = vpack.c.b16 %v771, %v770
          %v795 = vpack.c.b16 %v773, %v772
          %v796 = vpack.c.b16 %v775, %v774
          %v797 = vpack.c.b16 %v777, %v776
          %v798 = vpack.c.b16 %v779, %v778
          %v799 = vpack.c.b16 %v781, %v780
          %v800 = vpack.c.b16 %v783, %v782
          %v801 = vpack.c.b16 %v785, %v784
          %818 = vst [vmem:[#allocation2] sm:$0xff] %v786
          %819 = vst [vmem:[#allocation2 + $0x8] sm:$0xff] %v787
          %820 = vst [vmem:[#allocation2 + $0x10] sm:$0xff] %v788
          %821 = vst [vmem:[#allocation2 + $0x18] sm:$0xff] %v789
          %822 = vst [vmem:[#allocation2 + $0x20] sm:$0xff] %v790
          %823 = vst [vmem:[#allocation2 + $0x28] sm:$0xff] %v791
          %824 = vst [vmem:[#allocation2 + $0x30] sm:$0xff] %v792
          %825 = vst [vmem:[#allocation2 + $0x38] sm:$0xff] %v793
          %826 = vst [vmem:[#allocation2 + $0x40] sm:$0xff] %v794
          %827 = vst [vmem:[#allocation2 + $0x48] sm:$0xff] %v795
          %828 = vst [vmem:[#allocation2 + $0x50] sm:$0xff] %v796
          %829 = vst [vmem:[#allocation2 + $0x58] sm:$0xff] %v797
          %830 = vst [vmem:[#allocation2 + $0x60] sm:$0xff] %v798
          %831 = vst [vmem:[#allocation2 + $0x68] sm:$0xff] %v799
          %832 = vst [vmem:[#allocation2 + $0x70] sm:$0xff] %v800
          %833 = vst [vmem:[#allocation2 + $0x78] sm:$0xff] %v801
        $region60: #{tpu_custom_call.1} parent=39 // pred_fallthru
          _
        %v834 = vld [vmem:[#allocation2] sm:$0xff]
        %v835 = vld [vmem:[#allocation2 + $0x8] sm:$0xff]
        %v836 = vld [vmem:[#allocation2 + $0x10] sm:$0xff]
        %v837 = vld [vmem:[#allocation2 + $0x18] sm:$0xff]
        %v838 = vld [vmem:[#allocation2 + $0x20] sm:$0xff]
        %v839 = vld [vmem:[#allocation2 + $0x28] sm:$0xff]
        %v840 = vld [vmem:[#allocation2 + $0x30] sm:$0xff]
        %v841 = vld [vmem:[#allocation2 + $0x38] sm:$0xff]
        %v842 = vld [vmem:[#allocation2 + $0x40] sm:$0xff]
        %v843 = vld [vmem:[#allocation2 + $0x48] sm:$0xff]
        %v844 = vld [vmem:[#allocation2 + $0x50] sm:$0xff]
        %v845 = vld [vmem:[#allocation2 + $0x58] sm:$0xff]
        %v846 = vld [vmem:[#allocation2 + $0x60] sm:$0xff]
        %v847 = vld [vmem:[#allocation2 + $0x68] sm:$0xff]
        %v848 = vld [vmem:[#allocation2 + $0x70] sm:$0xff]
        %v849 = vld [vmem:[#allocation2 + $0x78] sm:$0xff]
        %v850 = vld [vmem:[%s296] sm:$0xff]
        %v851 = vld [vmem:[%s296 + $0x8] sm:$0xff]
        %v852 = vld [vmem:[%s296 + $0x10] sm:$0xff]
        %v853 = vld [vmem:[%s296 + $0x18] sm:$0xff]
        %v854 = vld [vmem:[%s296 + $0x20] sm:$0xff]
        %v855 = vld [vmem:[%s296 + $0x28] sm:$0xff]
        %v856 = vld [vmem:[%s296 + $0x30] sm:$0xff]
        %v857 = vld [vmem:[%s296 + $0x38] sm:$0xff]
        %v858 = vld [vmem:[%s296 + $0x40] sm:$0xff]
        %v859 = vld [vmem:[%s296 + $0x48] sm:$0xff]
        %v860 = vld [vmem:[%s296 + $0x50] sm:$0xff]
        %v861 = vld [vmem:[%s296 + $0x58] sm:$0xff]
        %v862 = vld [vmem:[%s296 + $0x60] sm:$0xff]
        %v863 = vld [vmem:[%s296 + $0x68] sm:$0xff]
        %v864 = vld [vmem:[%s296 + $0x70] sm:$0xff]
        %v865 = vld [vmem:[%s296 + $0x78] sm:$0xff]
        %v866 = vld [vmem:[%s296 + $0x80] sm:$0xff]
        %v867 = vld [vmem:[%s296 + $0x88] sm:$0xff]
        %v868 = vld [vmem:[%s296 + $0x90] sm:$0xff]
        %v869 = vld [vmem:[%s296 + $0x98] sm:$0xff]
        %v870 = vld [vmem:[%s296 + $0xa0] sm:$0xff]
        %v871 = vld [vmem:[%s296 + $0xa8] sm:$0xff]
        %v872 = vld [vmem:[%s296 + $0xb0] sm:$0xff]
        %v873 = vld [vmem:[%s296 + $0xb8] sm:$0xff]
        %v874 = vld [vmem:[%s296 + $0xc0] sm:$0xff]
        %v875 = vld [vmem:[%s296 + $0xc8] sm:$0xff]
        %v876 = vld [vmem:[%s296 + $0xd0] sm:$0xff]
        %v877 = vld [vmem:[%s296 + $0xd8] sm:$0xff]
        %v878 = vld [vmem:[%s296 + $0xe0] sm:$0xff]
        %v879 = vld [vmem:[%s296 + $0xe8] sm:$0xff]
        %v880 = vld [vmem:[%s296 + $0xf0] sm:$0xff]
        %v881 = vld [vmem:[%s296 + $0xf8] sm:$0xff]
        %v882 = vld [vmem:[%s337] sm:$0x3]
        %v884 = vlaneseq
        %v885 = vshrl.u32 %v884, 7
        %v886 = vsub.s32 0, %v885
        %v887 = vrot.slane %v882, %v886
        %v888 = vlaneseq
        %v889 = vshrl.u32 %v888, 7
        %v890 = vsub.s32 1, %v889
        %v891 = vrot.slane %v882, %v890
        %v910 = vunpack.c.l.b16 %v834
        %v911 = vunpack.c.h.b16 %v834
        %v912 = vunpack.c.l.b16 %v835
        %v913 = vunpack.c.h.b16 %v835
        %v914 = vunpack.c.l.b16 %v836
        %v915 = vunpack.c.h.b16 %v836
        %v916 = vunpack.c.l.b16 %v837
        %v917 = vunpack.c.h.b16 %v837
        %v918 = vunpack.c.l.b16 %v838
        %v919 = vunpack.c.h.b16 %v838
        %v920 = vunpack.c.l.b16 %v839
        %v921 = vunpack.c.h.b16 %v839
        %v922 = vunpack.c.l.b16 %v840
        %v923 = vunpack.c.h.b16 %v840
        %v924 = vunpack.c.l.b16 %v841
        %v925 = vunpack.c.h.b16 %v841
        %v926 = vunpack.c.l.b16 %v842
        %v927 = vunpack.c.h.b16 %v842
        %v928 = vunpack.c.l.b16 %v843
        %v929 = vunpack.c.h.b16 %v843
        %v930 = vunpack.c.l.b16 %v844
        %v931 = vunpack.c.h.b16 %v844
        %v932 = vunpack.c.l.b16 %v845
        %v933 = vunpack.c.h.b16 %v845
        %v934 = vunpack.c.l.b16 %v846
        %v935 = vunpack.c.h.b16 %v846
        %v936 = vunpack.c.l.b16 %v847
        %v937 = vunpack.c.h.b16 %v847
        %v938 = vunpack.c.l.b16 %v848
        %v939 = vunpack.c.h.b16 %v848
        %v940 = vunpack.c.l.b16 %v849
        %v941 = vunpack.c.h.b16 %v849
        %v942 = vpack.c.b16 %v912, %v910
        %v943 = vpack.c.b16 %v913, %v911
        %v944 = vpack.c.b16 %v916, %v914
        %v945 = vpack.c.b16 %v917, %v915
        %v946 = vpack.c.b16 %v920, %v918
        %v947 = vpack.c.b16 %v921, %v919
        %v948 = vpack.c.b16 %v924, %v922
        %v949 = vpack.c.b16 %v925, %v923
        %v950 = vpack.c.b16 %v928, %v926
        %v951 = vpack.c.b16 %v929, %v927
        %v952 = vpack.c.b16 %v932, %v930
        %v953 = vpack.c.b16 %v933, %v931
        %v954 = vpack.c.b16 %v936, %v934
        %v955 = vpack.c.b16 %v937, %v935
        %v956 = vpack.c.b16 %v940, %v938
        %v957 = vpack.c.b16 %v941, %v939
        %v1006 = vunpack.c.l.b16 %v850
        %v1007 = vunpack.c.h.b16 %v850
        %v1008 = vunpack.c.l.b16 %v851
        %v1009 = vunpack.c.h.b16 %v851
        %v1010 = vunpack.c.l.b16 %v852
        %v1011 = vunpack.c.h.b16 %v852
        %v1012 = vunpack.c.l.b16 %v853
        %v1013 = vunpack.c.h.b16 %v853
        %v1014 = vunpack.c.l.b16 %v854
        %v1015 = vunpack.c.h.b16 %v854
        %v1016 = vunpack.c.l.b16 %v855
        %v1017 = vunpack.c.h.b16 %v855
        %v1018 = vunpack.c.l.b16 %v856
        %v1019 = vunpack.c.h.b16 %v856
        %v1020 = vunpack.c.l.b16 %v857
        %v1021 = vunpack.c.h.b16 %v857
        %v1022 = vunpack.c.l.b16 %v858
        %v1023 = vunpack.c.h.b16 %v858
        %v1024 = vunpack.c.l.b16 %v859
        %v1025 = vunpack.c.h.b16 %v859
        %v1026 = vunpack.c.l.b16 %v860
        %v1027 = vunpack.c.h.b16 %v860
        %v1028 = vunpack.c.l.b16 %v861
        %v1029 = vunpack.c.h.b16 %v861
        %v1030 = vunpack.c.l.b16 %v862
        %v1031 = vunpack.c.h.b16 %v862
        %v1032 = vunpack.c.l.b16 %v863
        %v1033 = vunpack.c.h.b16 %v863
        %v1034 = vunpack.c.l.b16 %v864
        %v1035 = vunpack.c.h.b16 %v864
        %v1036 = vunpack.c.l.b16 %v865
        %v1037 = vunpack.c.h.b16 %v865
        %v1038 = vunpack.c.l.b16 %v866
        %v1039 = vunpack.c.h.b16 %v866
        %v1040 = vunpack.c.l.b16 %v867
        %v1041 = vunpack.c.h.b16 %v867
        %v1042 = vunpack.c.l.b16 %v868
        %v1043 = vunpack.c.h.b16 %v868
        %v1044 = vunpack.c.l.b16 %v869
        %v1045 = vunpack.c.h.b16 %v869
        %v1046 = vunpack.c.l.b16 %v870
        %v1047 = vunpack.c.h.b16 %v870
        %v1048 = vunpack.c.l.b16 %v871
        %v1049 = vunpack.c.h.b16 %v871
        %v1050 = vunpack.c.l.b16 %v872
        %v1051 = vunpack.c.h.b16 %v872
        %v1052 = vunpack.c.l.b16 %v873
        %v1053 = vunpack.c.h.b16 %v873
        %v1054 = vunpack.c.l.b16 %v874
        %v1055 = vunpack.c.h.b16 %v874
        %v1056 = vunpack.c.l.b16 %v875
        %v1057 = vunpack.c.h.b16 %v875
        %v1058 = vunpack.c.l.b16 %v876
        %v1059 = vunpack.c.h.b16 %v876
        %v1060 = vunpack.c.l.b16 %v877
        %v1061 = vunpack.c.h.b16 %v877
        %v1062 = vunpack.c.l.b16 %v878
        %v1063 = vunpack.c.h.b16 %v878
        %v1064 = vunpack.c.l.b16 %v879
        %v1065 = vunpack.c.h.b16 %v879
        %v1066 = vunpack.c.l.b16 %v880
        %v1067 = vunpack.c.h.b16 %v880
        %v1068 = vunpack.c.l.b16 %v881
        %v1069 = vunpack.c.h.b16 %v881
        %v1070 = vpack.c.b16 %v1008, %v1006
        %v1071 = vpack.c.b16 %v1009, %v1007
        %v1072 = vpack.c.b16 %v1012, %v1010
        %v1073 = vpack.c.b16 %v1013, %v1011
        %v1074 = vpack.c.b16 %v1016, %v1014
        %v1075 = vpack.c.b16 %v1017, %v1015
        %v1076 = vpack.c.b16 %v1020, %v1018
        %v1077 = vpack.c.b16 %v1021, %v1019
        %v1078 = vpack.c.b16 %v1024, %v1022
        %v1079 = vpack.c.b16 %v1025, %v1023
        %v1080 = vpack.c.b16 %v1028, %v1026
        %v1081 = vpack.c.b16 %v1029, %v1027
        %v1082 = vpack.c.b16 %v1032, %v1030
        %v1083 = vpack.c.b16 %v1033, %v1031
        %v1084 = vpack.c.b16 %v1036, %v1034
        %v1085 = vpack.c.b16 %v1037, %v1035
        %v1086 = vpack.c.b16 %v1040, %v1038
        %v1087 = vpack.c.b16 %v1041, %v1039
        %v1088 = vpack.c.b16 %v1044, %v1042
        %v1089 = vpack.c.b16 %v1045, %v1043
        %v1090 = vpack.c.b16 %v1048, %v1046
        %v1091 = vpack.c.b16 %v1049, %v1047
        %v1092 = vpack.c.b16 %v1052, %v1050
        %v1093 = vpack.c.b16 %v1053, %v1051
        %v1094 = vpack.c.b16 %v1056, %v1054
        %v1095 = vpack.c.b16 %v1057, %v1055
        %v1096 = vpack.c.b16 %v1060, %v1058
        %v1097 = vpack.c.b16 %v1061, %v1059
        %v1098 = vpack.c.b16 %v1064, %v1062
        %v1099 = vpack.c.b16 %v1065, %v1063
        %v1100 = vpack.c.b16 %v1068, %v1066
        %v1101 = vpack.c.b16 %v1069, %v1067
        %1134 = vmatprep.subr.bf16.mxu0 %v1085
        %1135 = vmatpush1.bf16.msra.mxu0 %v1084
        %1136 = vmatprep.subr.bf16.mxu0 %v1083
        %1137 = vmatpush1.bf16.msra.mxu0 %v1082
        %1138 = vmatprep.subr.bf16.mxu0 %v1081
        %1139 = vmatpush1.bf16.msra.mxu0 %v1080
        %1140 = vmatprep.subr.bf16.mxu0 %v1079
        %1141 = vmatpush1.bf16.msra.mxu0 %v1078
        %1142 = vmatprep.subr.bf16.mxu0 %v1077
        %1143 = vmatpush1.bf16.msra.mxu0 %v1076
        %1144 = vmatprep.subr.bf16.mxu0 %v1075
        %1145 = vmatpush1.bf16.msra.mxu0 %v1074
        %1146 = vmatprep.subr.bf16.mxu0 %v1073
        %1147 = vmatpush1.bf16.msra.mxu0 %v1072
        %1148 = vmatprep.subr.bf16.mxu0 %v1071
        %1149 = vmatpush1.bf16.msra.mxu0 %v1070
        %1150 = vmatprep.subr.bf16.mxu0 %v1101
        %1151 = vmatpush2.bf16.msra.mxu0 %v1100
        %1152 = vmatprep.subr.bf16.mxu0 %v1099
        %1153 = vmatpush2.bf16.msra.mxu0 %v1098
        %1154 = vmatprep.subr.bf16.mxu0 %v1097
        %1155 = vmatpush2.bf16.msra.mxu0 %v1096
        %1156 = vmatprep.subr.bf16.mxu0 %v1095
        %1157 = vmatpush2.bf16.msra.mxu0 %v1094
        %1158 = vmatprep.subr.bf16.mxu0 %v1093
        %1159 = vmatpush2.bf16.msra.mxu0 %v1092
        %1160 = vmatprep.subr.bf16.mxu0 %v1091
        %1161 = vmatpush2.bf16.msra.mxu0 %v1090
        %1162 = vmatprep.subr.bf16.mxu0 %v1089
        %1163 = vmatpush2.bf16.msra.mxu0 %v1088
        %1164 = vmatprep.subr.bf16.mxu0 %v1087
        %1165 = vmatpush2.bf16.msra.mxu0 %v1086
        %1166 = vmatprep.mubr.bf16.mxu0 %v943
        %1167 = vmatmul.mubr.bf16.gmra.mxu0 %v942
        %v1168 = vpop.f32.mrf.mxu0
        %v1169 = vadd.f32 %v887, %v1168
        %v1170 = vpop.f32.mrf.mxu0
        %v1171 = vadd.f32 %v891, %v1170
        %v1172 = vpop.f32.mrf.mxu0
        %v1173 = vadd.f32 %v887, %v1172
        %v1174 = vpop.f32.mrf.mxu0
        %v1175 = vadd.f32 %v891, %v1174
        %1176 = vmatprep.mubr.bf16.mxu0 %v945
        %1177 = vmatmul.mubr.bf16.gmra.mxu0 %v944
        %v1178 = vpop.f32.mrf.mxu0
        %v1179 = vadd.f32 %v887, %v1178
        %v1180 = vpop.f32.mrf.mxu0
        %v1181 = vadd.f32 %v891, %v1180
        %v1182 = vpop.f32.mrf.mxu0
        %v1183 = vadd.f32 %v887, %v1182
        %v1184 = vpop.f32.mrf.mxu0
        %v1185 = vadd.f32 %v891, %v1184
        %1186 = vmatprep.mubr.bf16.mxu0 %v947
        %1187 = vmatmul.mubr.bf16.gmra.mxu0 %v946
        %v1188 = vpop.f32.mrf.mxu0
        %v1189 = vadd.f32 %v887, %v1188
        %v1190 = vpop.f32.mrf.mxu0
        %v1191 = vadd.f32 %v891, %v1190
        %v1192 = vpop.f32.mrf.mxu0
        %v1193 = vadd.f32 %v887, %v1192
        %v1194 = vpop.f32.mrf.mxu0
        %v1195 = vadd.f32 %v891, %v1194
        %1196 = vmatprep.mubr.bf16.mxu0 %v949
        %1197 = vmatmul.mubr.bf16.gmra.mxu0 %v948
        %v1198 = vpop.f32.mrf.mxu0
        %v1199 = vadd.f32 %v887, %v1198
        %v1200 = vpop.f32.mrf.mxu0
        %v1201 = vadd.f32 %v891, %v1200
        %v1202 = vpop.f32.mrf.mxu0
        %v1203 = vadd.f32 %v887, %v1202
        %v1204 = vpop.f32.mrf.mxu0
        %v1205 = vadd.f32 %v891, %v1204
        %1206 = vmatprep.mubr.bf16.mxu0 %v951
        %1207 = vmatmul.mubr.bf16.gmra.mxu0 %v950
        %v1208 = vpop.f32.mrf.mxu0
        %v1209 = vadd.f32 %v887, %v1208
        %v1210 = vpop.f32.mrf.mxu0
        %v1211 = vadd.f32 %v891, %v1210
        %v1212 = vpop.f32.mrf.mxu0
        %v1213 = vadd.f32 %v887, %v1212
        %v1214 = vpop.f32.mrf.mxu0
        %v1215 = vadd.f32 %v891, %v1214
        %1216 = vmatprep.mubr.bf16.mxu0 %v953
        %1217 = vmatmul.mubr.bf16.gmra.mxu0 %v952
        %v1218 = vpop.f32.mrf.mxu0
        %v1219 = vadd.f32 %v887, %v1218
        %v1220 = vpop.f32.mrf.mxu0
        %v1221 = vadd.f32 %v891, %v1220
        %v1222 = vpop.f32.mrf.mxu0
        %v1223 = vadd.f32 %v887, %v1222
        %v1224 = vpop.f32.mrf.mxu0
        %v1225 = vadd.f32 %v891, %v1224
        %1226 = vmatprep.mubr.bf16.mxu0 %v955
        %1227 = vmatmul.mubr.bf16.gmra.mxu0 %v954
        %v1228 = vpop.f32.mrf.mxu0
        %v1229 = vadd.f32 %v887, %v1228
        %v1230 = vpop.f32.mrf.mxu0
        %v1231 = vadd.f32 %v891, %v1230
        %v1232 = vpop.f32.mrf.mxu0
        %v1233 = vadd.f32 %v887, %v1232
        %v1234 = vpop.f32.mrf.mxu0
        %v1235 = vadd.f32 %v891, %v1234
        %1236 = vmatprep.mubr.bf16.mxu0 %v957
        %1237 = vmatmul.mubr.bf16.gmra.mxu0 %v956
        %v1238 = vpop.f32.mrf.mxu0
        %v1239 = vadd.f32 %v887, %v1238
        %v1240 = vpop.f32.mrf.mxu0
        %v1241 = vadd.f32 %v891, %v1240
        %v1242 = vpop.f32.mrf.mxu0
        %v1243 = vadd.f32 %v887, %v1242
        %v1244 = vpop.f32.mrf.mxu0
        %v1245 = vadd.f32 %v891, %v1244
        %1246 = vdwg.mxu0
        %v1247 = vpack.c.bf16 %v1173, %v1169
        %v1248 = vpack.c.bf16 %v1175, %v1171
        %v1249 = vpack.c.bf16 %v1183, %v1179
        %v1250 = vpack.c.bf16 %v1185, %v1181
        %v1251 = vpack.c.bf16 %v1193, %v1189
        %v1252 = vpack.c.bf16 %v1195, %v1191
        %v1253 = vpack.c.bf16 %v1203, %v1199
        %v1254 = vpack.c.bf16 %v1205, %v1201
        %v1255 = vpack.c.bf16 %v1213, %v1209
        %v1256 = vpack.c.bf16 %v1215, %v1211
        %v1257 = vpack.c.bf16 %v1223, %v1219
        %v1258 = vpack.c.bf16 %v1225, %v1221
        %v1259 = vpack.c.bf16 %v1233, %v1229
        %v1260 = vpack.c.bf16 %v1235, %v1231
        %v1261 = vpack.c.bf16 %v1243, %v1239
        %v1262 = vpack.c.bf16 %v1245, %v1241
        %v1279 = vunpack.c.l.b16 %v1247
        %v1280 = vunpack.c.l.b16 %v1248
        %v1281 = vunpack.c.h.b16 %v1247
        %v1282 = vunpack.c.h.b16 %v1248
        %v1283 = vunpack.c.l.b16 %v1249
        %v1284 = vunpack.c.l.b16 %v1250
        %v1285 = vunpack.c.h.b16 %v1249
        %v1286 = vunpack.c.h.b16 %v1250
        %v1287 = vunpack.c.l.b16 %v1251
        %v1288 = vunpack.c.l.b16 %v1252
        %v1289 = vunpack.c.h.b16 %v1251
        %v1290 = vunpack.c.h.b16 %v1252
        %v1291 = vunpack.c.l.b16 %v1253
        %v1292 = vunpack.c.l.b16 %v1254
        %v1293 = vunpack.c.h.b16 %v1253
        %v1294 = vunpack.c.h.b16 %v1254
        %v1295 = vunpack.c.l.b16 %v1255
        %v1296 = vunpack.c.l.b16 %v1256
        %v1297 = vunpack.c.h.b16 %v1255
        %v1298 = vunpack.c.h.b16 %v1256
        %v1299 = vunpack.c.l.b16 %v1257
        %v1300 = vunpack.c.l.b16 %v1258
        %v1301 = vunpack.c.h.b16 %v1257
        %v1302 = vunpack.c.h.b16 %v1258
        %v1303 = vunpack.c.l.b16 %v1259
        %v1304 = vunpack.c.l.b16 %v1260
        %v1305 = vunpack.c.h.b16 %v1259
        %v1306 = vunpack.c.h.b16 %v1260
        %v1307 = vunpack.c.l.b16 %v1261
        %v1308 = vunpack.c.l.b16 %v1262
        %v1309 = vunpack.c.h.b16 %v1261
        %v1310 = vunpack.c.h.b16 %v1262
        %v1311 = vpack.c.b16 %v1280, %v1279
        %v1312 = vpack.c.b16 %v1282, %v1281
        %v1313 = vpack.c.b16 %v1284, %v1283
        %v1314 = vpack.c.b16 %v1286, %v1285
        %v1315 = vpack.c.b16 %v1288, %v1287
        %v1316 = vpack.c.b16 %v1290, %v1289
        %v1317 = vpack.c.b16 %v1292, %v1291
        %v1318 = vpack.c.b16 %v1294, %v1293
        %v1319 = vpack.c.b16 %v1296, %v1295
        %v1320 = vpack.c.b16 %v1298, %v1297
        %v1321 = vpack.c.b16 %v1300, %v1299
        %v1322 = vpack.c.b16 %v1302, %v1301
        %v1323 = vpack.c.b16 %v1304, %v1303
        %v1324 = vpack.c.b16 %v1306, %v1305
        %v1325 = vpack.c.b16 %v1308, %v1307
        %v1326 = vpack.c.b16 %v1310, %v1309
        %1343 = vst [vmem:[%s331] sm:$0xff] %v1311
        %1344 = vst [vmem:[%s331 + $0x8] sm:$0xff] %v1312
        %1345 = vst [vmem:[%s331 + $0x10] sm:$0xff] %v1313
        %1346 = vst [vmem:[%s331 + $0x18] sm:$0xff] %v1314
        %1347 = vst [vmem:[%s331 + $0x20] sm:$0xff] %v1315
        %1348 = vst [vmem:[%s331 + $0x28] sm:$0xff] %v1316
        %1349 = vst [vmem:[%s331 + $0x30] sm:$0xff] %v1317
        %1350 = vst [vmem:[%s331 + $0x38] sm:$0xff] %v1318
        %1351 = vst [vmem:[%s331 + $0x40] sm:$0xff] %v1319
        %1352 = vst [vmem:[%s331 + $0x48] sm:$0xff] %v1320
        %1353 = vst [vmem:[%s331 + $0x50] sm:$0xff] %v1321
        %1354 = vst [vmem:[%s331 + $0x58] sm:$0xff] %v1322
        %1355 = vst [vmem:[%s331 + $0x60] sm:$0xff] %v1323
        %1356 = vst [vmem:[%s331 + $0x68] sm:$0xff] %v1324
        %1357 = vst [vmem:[%s331 + $0x70] sm:$0xff] %v1325
        %1358 = vst [vmem:[%s331 + $0x78] sm:$0xff] %v1326
        %s1359 = sand.u32 %s163, 1
        %s1360 = scalar_lea.sflag [#allocation5], %s1359
        %s1361 = sand.u32 %s163, 1
        %s1362 = smul.addr %s1361, 128
        %s1363 = scalar_lea.vmem [#allocation10], %s1362
        // Predicated region
        $region61: #{tpu_custom_call.1} parent=39 // pred_check
          %p1364 = pneg %p173
        $region62: #{tpu_custom_call.1} parent=39 // pred_check_branch
          %1366 = sbr.rel (%p1364) target = $region64
        $region63: #{tpu_custom_call.1} parent=39 // pred_region
          %s1367 = smul.u32 16, %s25
          %s1368 = smul.u32 2, %s26
          %s1370 = ssub.s32 2048, 2048
          %1371 = vsyncadd %s1360, %s1370
          %s1372 = smul.addr %s1367, 6
          %s1373 = sadd.s32 %s1368, %s1372
          %s1374 = smul.addr %s1373, 64
          %s1375 = scalar_lea.hbm %s5, %s1374
          %s1376 = sshll.u32 %s1363, 4
          %s1377 = int_to_ptr.vmem [resolvable:$true] %s1376
          %1382 = dma.vmem_to_hbm [thread:$0]  %s1377, 2048, %s1375, %s1360, 128, 384, 8
        $region64: #{tpu_custom_call.1} parent=39 // pred_fallthru
          _
      $region40: #{tpu_custom_call.1} parent=5 // pred_fallthru
        _
      %p1383 = scmp.le.s32.totalorder 2, %s16
      // Predicated region
      $region65: #{tpu_custom_call.1} parent=5 // pred_check
        %p1384 = pneg %p1383
      $region66: #{tpu_custom_call.1} parent=5 // pred_check_branch
        %1386 = sbr.rel (%p1384) target = $region68
      $region67: #{tpu_custom_call.1} parent=5 // pred_region
        %s1387 = ssub.s32 %s16, 2
        // Predicated region
        $region69: #{tpu_custom_call.1} parent=67 // pred_check
          %p1388 = pneg %p179
        $region70: #{tpu_custom_call.1} parent=67 // pred_check_branch
          %1390 = sbr.rel (%p1388) target = $region72
        $region71: #{tpu_custom_call.1} parent=67 // pred_region
          %s1391 = sand.u32 %s164, 1
          %s1392 = scalar_lea.sflag [#allocation5], %s1391
          %s1393 = sand.u32 %s164, 1
          %s1394 = smul.addr %s1393, 128
          %s1395 = scalar_lea.vmem [#allocation10], %s1394
          %1396 = dma.done %s1392, 2048
        $region72: #{tpu_custom_call.1} parent=67 // pred_fallthru
          _
      $region68: #{tpu_custom_call.1} parent=5 // pred_fallthru
        _
    $region6: #{tpu_custom_call.1} parent=1 // loop_footer
      %s20 = sadd.s32 1, %s16
    $region7: #{tpu_custom_call.1} parent=1 // loop_footer_branch
      %15 = sbr.rel target = $region3
    $region8: #{tpu_custom_call.1} parent=1 // loop_exit
      _
    %1397 = vsyncpa [#allocation4], 1
    %s1398 = scalar_lea.sflag [#allocation4], 1
    %1399 = vsyncpa %s1398, 1
    %1400 = vsyncpa [#allocation7], 1
    %1401 = vsyncpa [#allocation5], 1
    %s1402 = scalar_lea.sflag [#allocation5], 1
    %1403 = vsyncpa %s1402, 1

</llo_original>
